<compile_context>
chip_gen: v5e
topology: v5e:2x2
jax: 0.10.0
libtpu: 0.0.40
codegen_flags: <defaults>
</compile_context>

<pallas_src>
import functools

import jax
import jax.numpy as jnp
from jax.experimental import pallas as pl
from jax.experimental.pallas import tpu as pltpu


# ----------------------------------------------------------------------------
# Single fused EncoderLayer kernel (one grid step = one batch element)
# ----------------------------------------------------------------------------
def _encoder_layer_kernel(dyn_ref, stat_ref, npm_ref, ln_ref,
                          wq_ref, wk_ref, wv_ref, wfc1_ref,
                          w11_ref, w12_ref, pff1_vec_ref,
                          w21_ref, w22_ref, pff2_vec_ref,
                          *out_refs,
                          n_head, d_k, d_v, inv_temperature, diag_mask,
                          pff2_ln, eps, return_attn, mxu_dtype):
    if return_attn:
        dyn_out_ref, stat_out_ref, attn_ref = out_refs
    else:
        dyn_out_ref, stat_out_ref = out_refs
        attn_ref = None

    f32 = jnp.float32
    dyn = dyn_ref[0]                       # (L, Dbn)  f32
    stat = stat_ref[0]                     # (L, Dbn)  f32
    npm = npm_ref[0]                       # (L, 1)    f32
    L = dyn.shape[0]
    d_model = w12_ref.shape[1]

    def mm(a, w_ref):
        # bf16 operands, f32 accumulation on the MXU.
        return jnp.dot(a.astype(mxu_dtype), w_ref[...],
                       preferred_element_type=f32)

    # ---- LayerNorm1/2 share mean/var (same input `dyn`); LayerNorm3 on `stat`.
    def norm(x):
        mu = jnp.mean(x, axis=-1, keepdims=True)
        var = jnp.mean(jnp.square(x - mu), axis=-1, keepdims=True)
        return (x - mu) * jax.lax.rsqrt(var + eps)

    dyn_n = norm(dyn)
    stat_n = norm(stat)
    q_in = dyn_n * ln_ref[0:1, :] + ln_ref[1:2, :]
    k_in = dyn_n * ln_ref[2:3, :] + ln_ref[3:4, :]
    v_in = stat_n * ln_ref[4:5, :] + ln_ref[5:6, :]

    # ---- Q/K/V projections (bias-free); fold 1/temperature into q once.
    q = mm(q_in, wq_ref) * inv_temperature     # (L, H*d_k) f32
    k = mm(k_in, wk_ref)                       # (L, H*d_k) f32
    v = mm(v_in, wv_ref)                       # (L, H*d_v) f32

    # ---- per-head attention; ctx assembled lane-dense into (L, H*d_v).
    if diag_mask:
        rows = jax.lax.broadcasted_iota(jnp.int32, (L, L), 0)
        cols = jax.lax.broadcasted_iota(jnp.int32, (L, L), 1)
        diag = rows == cols
    ctx_parts = []
    for h in range(n_head):
        qh = q[:, h * d_k:(h + 1) * d_k].astype(mxu_dtype)
        kh = k[:, h * d_k:(h + 1) * d_k].astype(mxu_dtype)
        vh = v[:, h * d_v:(h + 1) * d_v].astype(mxu_dtype)
        # scores = q @ k^T (q already carries 1/temperature)
        s = jax.lax.dot_general(qh, kh, (((1,), (1,)), ((), ())),
                                preferred_element_type=f32)     # (L, L)
        if diag_mask:
            s = jnp.where(diag, jnp.float32(-1e32), s)          # masked_fill
        m = jnp.max(s, axis=-1, keepdims=True)
        p = jnp.exp(s - m)
        inv_l = pl.reciprocal(jnp.sum(p, axis=-1, keepdims=True), approx=True)
        attn_h = p * inv_l
        if return_attn:
            # TODO(synk): attn last dim is L (<128 here) -> masked partial
            # stores; emit bf16 / skip (return_attn=False) when not needed.
            attn_ref[h, 0] = attn_h.astype(attn_ref.dtype)
        ctx_parts.append(jnp.dot(attn_h.astype(mxu_dtype), vh,
                                 preferred_element_type=f32))
    ctx = jnp.concatenate(ctx_parts, axis=-1)                   # (L, H*d_v)

    # ---- dynamic path: fc1 -> *mask -> pff_n1 (W1, tanh, W2, +res, LN) -> *mask
    npm_b = jnp.broadcast_to(npm, (L, d_model))   # hoisted broadcast (reused 3x)
    x = mm(ctx, wfc1_ref) * npm_b
    h1 = jnp.tanh(mm(x, w11_ref) + pff1_vec_ref[0:1, :])
    y = mm(h1, w12_ref) + pff1_vec_ref[1:2, :] + x
    mu = jnp.mean(y, axis=-1, keepdims=True)
    var = jnp.mean(jnp.square(y - mu), axis=-1, keepdims=True)
    y = ((y - mu) * jax.lax.rsqrt(var + eps) * pff1_vec_ref[2:3, :]
         + pff1_vec_ref[3:4, :])
    dyn_out_ref[0] = (y * npm_b).astype(dyn_out_ref.dtype)

    # ---- static path: pff_n2 on the ORIGINAL static input (*mask in/out).
    xs = stat * npm
    h2 = jnp.tanh(mm(xs, w21_ref) + pff2_vec_ref[0:1, :])
    ys = mm(h2, w22_ref) + pff2_vec_ref[1:2, :]
    if pff2_ln:   # PositionwiseFeedForward only layer-norms when dims[0]==dims[-1]
        mu = jnp.mean(ys, axis=-1, keepdims=True)
        var = jnp.mean(jnp.square(ys - mu), axis=-1, keepdims=True)
        ys = ((ys - mu) * jax.lax.rsqrt(var + eps) * pff2_vec_ref[2:3, :]
              + pff2_vec_ref[3:4, :])
    stat_out_ref[0] = (ys * npm_b).astype(stat_out_ref.dtype)


# ----------------------------------------------------------------------------
# EncoderLayer forward (inference)
# ----------------------------------------------------------------------------
def encoder_layer_forward(params, dynamic, static, slf_attn_mask, non_pad_mask,
                          *, diag_mask_flag=True, matmul_dtype=jnp.bfloat16,
                          return_attn=True, eps=1e-5):
    """Equivalent of EncoderLayer.forward (dropout = identity at inference).

    `slf_attn_mask` is accepted for signature parity but unused: the reference
    module rebuilds its own diag mask internally and calls the attention with
    mask=None, so the passed mask never reaches compute.
    """
    del slf_attn_mask
    # TODO(synk): training-mode nn.Dropout not implemented (inference identity).
    H, Dk, Dv, Dm = params["n_head"], params["d_k"], params["d_v"], params["d_model"]
    B, L, Dbn = dynamic.shape
    pff2_ln = (Dbn == Dm)

    # Pack per-feature vectors into single operands (fewer tiny DMAs).
    ln_pack = jnp.stack([params["ln1_g"], params["ln1_b"],
                         params["ln2_g"], params["ln2_b"],
                         params["ln3_g"], params["ln3_b"]], axis=0)      # (6, Dbn)
    pff1_vec = jnp.stack([params["pff1_b1"], params["pff1_b2"],
                          params["pff1_g"], params["pff1_beta"]], axis=0)  # (4, Dm)
    if pff2_ln:
        pff2_vec = jnp.stack([params["pff2_b1"], params["pff2_b2"],
                              params["pff2_g"], params["pff2_beta"]], axis=0)
    else:
        pff2_vec = jnp.stack([params["pff2_b1"], params["pff2_b2"]], axis=0)

    # bf16 weights for the MXU (activations cast in-kernel, accumulate f32).
    md = matmul_dtype
    wq = params["w_qs"].astype(md)
    wk = params["w_ks"].astype(md)
    wv = params["w_vs"].astype(md)
    wfc1 = params["w_fc1"].astype(md)
    w11 = params["pff1_w1"].astype(md)
    w12 = params["pff1_w2"].astype(md)
    w21 = params["pff2_w1"].astype(md)
    w22 = params["pff2_w2"].astype(md)

    # TODO(synk): for large d_model, K-tile the FF matmuls (reduction grid axis
    # + VMEM accumulator) so resident weights fit v7x's 64 MiB VMEM.
    def full_spec(shape):
        return pl.BlockSpec(shape, lambda b, _n=len(shape): (0,) * _n)

    def row_spec(d):
        return pl.BlockSpec((1, L, d), lambda b: (b, 0, 0))

    in_specs = [row_spec(Dbn), row_spec(Dbn), row_spec(1), full_spec(ln_pack.shape),
                full_spec(wq.shape), full_spec(wk.shape), full_spec(wv.shape),
                full_spec(wfc1.shape), full_spec(w11.shape), full_spec(w12.shape),
                full_spec(pff1_vec.shape), full_spec(w21.shape),
                full_spec(w22.shape), full_spec(pff2_vec.shape)]

    out_specs = [pl.BlockSpec((1, L, Dm), lambda b: (b, 0, 0)),
                 pl.BlockSpec((1, L, Dm), lambda b: (b, 0, 0))]
    out_shapes = [jax.ShapeDtypeStruct((B, L, Dm), dynamic.dtype),
                  jax.ShapeDtypeStruct((B, L, Dm), dynamic.dtype)]
    if return_attn:
        out_specs.append(pl.BlockSpec((H, 1, L, L), lambda b: (0, b, 0, 0)))
        out_shapes.append(jax.ShapeDtypeStruct((H, B, L, L), jnp.float32))

    kernel = functools.partial(
        _encoder_layer_kernel, n_head=H, d_k=Dk, d_v=Dv,
        inv_temperature=1.0 / (float(Dk) ** 0.5), diag_mask=diag_mask_flag,
        pff2_ln=pff2_ln, eps=eps, return_attn=return_attn, mxu_dtype=md)

    outs = pl.pallas_call(
        kernel,
        grid=(B,),
        in_specs=in_specs,
        out_specs=tuple(out_specs),
        out_shape=tuple(out_shapes),
        compiler_params=pltpu.CompilerParams(dimension_semantics=("parallel",)),
    )(dynamic, static, non_pad_mask, ln_pack, wq, wk, wv, wfc1,
      w11, w12, pff1_vec, w21, w22, pff2_vec)

    if return_attn:
        dyn_out, stat_out, attn4 = outs
        # (H, B, L, L) -> (H*B, L, L): same head-major layout as torch.
        return dyn_out, stat_out, attn4.reshape(H * B, L, L)
    dyn_out, stat_out = outs
    return dyn_out, stat_out, None


# ----------------------------------------------------------------------------
# Parameter init (weights stored as [in, out], i.e. transposed vs torch)
# ----------------------------------------------------------------------------
def init_encoder_layer_params(key, *, n_head, d_model, d_k, d_v, bottle_neck,
                              dtype=jnp.float32):
    def uniform(k, shape, bound):
        return jax.random.uniform(k, shape, minval=-bound, maxval=bound,
                                  dtype=dtype)

    ks = iter(jax.random.split(key, 24))
    p = dict(n_head=n_head, d_model=d_model, d_k=d_k, d_v=d_v,
             bottle_neck=bottle_neck)
    for name in ("ln1", "ln2", "ln3"):
        p[f"{name}_g"] = 1.0 + 0.1 * jax.random.normal(next(ks), (bottle_neck,), dtype=dtype)
        p[f"{name}_b"] = 0.1 * jax.random.normal(next(ks), (bottle_neck,), dtype=dtype)
    std_qk = (2.0 / (d_model + d_k)) ** 0.5
    std_v = (2.0 / (d_model + d_v)) ** 0.5
    p["w_qs"] = std_qk * jax.random.normal(next(ks), (bottle_neck, n_head * d_k), dtype=dtype)
    p["w_ks"] = std_qk * jax.random.normal(next(ks), (bottle_neck, n_head * d_k), dtype=dtype)
    p["w_vs"] = std_v * jax.random.normal(next(ks), (bottle_neck, n_head * d_v), dtype=dtype)
    p["w_fc1"] = uniform(next(ks), (n_head * d_v, d_model), (n_head * d_v) ** -0.5)
    p["pff1_w1"] = uniform(next(ks), (d_model, d_model), d_model ** -0.5)
    p["pff1_b1"] = uniform(next(ks), (d_model,), d_model ** -0.5)
    p["pff1_w2"] = uniform(next(ks), (d_model, d_model), d_model ** -0.5)
    p["pff1_b2"] = uniform(next(ks), (d_model,), d_model ** -0.5)
    p["pff1_g"] = 1.0 + 0.1 * jax.random.normal(next(ks), (d_model,), dtype=dtype)
    p["pff1_beta"] = 0.1 * jax.random.normal(next(ks), (d_model,), dtype=dtype)
    p["pff2_w1"] = uniform(next(ks), (bottle_neck, d_model), bottle_neck ** -0.5)
    p["pff2_b1"] = uniform(next(ks), (d_model,), bottle_neck ** -0.5)
    p["pff2_w2"] = uniform(next(ks), (d_model, d_model), d_model ** -0.5)
    p["pff2_b2"] = uniform(next(ks), (d_model,), d_model ** -0.5)
    p["pff2_g"] = 1.0 + 0.1 * jax.random.normal(next(ks), (d_model,), dtype=dtype)
    p["pff2_beta"] = 0.1 * jax.random.normal(next(ks), (d_model,), dtype=dtype)
    return p


# ----------------------------------------------------------------------------
# Pure-JAX reference (mirrors the kernel's bf16-operand / f32-accumulate
# matmuls so the correctness check is dtype-consistent; with
# matmul_dtype=jnp.float32 it is the exact f32 EncoderLayer forward).
# ----------------------------------------------------------------------------
def encoder_layer_ref(p, dynamic, static, non_pad_mask, *, diag_mask_flag=True,
                      matmul_dtype=jnp.bfloat16, eps=1e-5):
    f32 = jnp.float32
    md = matmul_dtype
    H, Dk, Dv, Dm = p["n_head"], p["d_k"], p["d_v"], p["d_model"]
    B, L, Dbn = dynamic.shape

    def mm(a, w):
        return jnp.dot(a.astype(md), w.astype(md), preferred_element_type=f32)

    def ln(x, g, b):
        mu = jnp.mean(x, axis=-1, keepdims=True)
        var = jnp.mean(jnp.square(x - mu), axis=-1, keepdims=True)
        return (x - mu) * jax.lax.rsqrt(var + eps) * g + b

    dyn2 = dynamic.reshape(B * L, Dbn)
    stat2 = static.reshape(B * L, Dbn)
    npm2 = non_pad_mask.reshape(B * L, 1)

    inv_t = 1.0 / (float(Dk) ** 0.5)
    q2 = mm(ln(dyn2, p["ln1_g"], p["ln1_b"]), p["w_qs"]) * inv_t
    k2 = mm(ln(dyn2, p["ln2_g"], p["ln2_b"]), p["w_ks"])
    v2 = mm(ln(stat2, p["ln3_g"], p["ln3_b"]), p["w_vs"])

    def split(x, d):
        return x.reshape(B, L, H, d).transpose(2, 0, 1, 3)      # (H, B, L, d)

    q4, k4, v4 = split(q2, Dk), split(k2, Dk), split(v2, Dv)
    s = jnp.einsum("hbqd,hbkd->hbqk", q4.astype(md), k4.astype(md),
                   preferred_element_type=f32)
    if diag_mask_flag:
        s = jnp.where(jnp.eye(L, dtype=bool), jnp.float32(-1e32), s)
    attn = jax.nn.softmax(s, axis=-1)
    ctx = jnp.einsum("hbqk,hbkd->hbqd", attn.astype(md), v4.astype(md),
                     preferred_element_type=f32)
    ctx2 = ctx.transpose(1, 2, 0, 3).reshape(B * L, H * Dv)

    x = mm(ctx2, p["w_fc1"]) * npm2
    h1 = jnp.tanh(mm(x, p["pff1_w1"]) + p["pff1_b1"])
    y = mm(h1, p["pff1_w2"]) + p["pff1_b2"] + x
    dyn_out = ln(y, p["pff1_g"], p["pff1_beta"]) * npm2

    xs = stat2 * npm2
    h2 = jnp.tanh(mm(xs, p["pff2_w1"]) + p["pff2_b1"])
    ys = mm(h2, p["pff2_w2"]) + p["pff2_b2"]
    if Dbn == Dm:
        ys = ln(ys, p["pff2_g"], p["pff2_beta"])
    stat_out = ys * npm2

    return (dyn_out.reshape(B, L, Dm), stat_out.reshape(B, L, Dm),
            attn.reshape(H * B, L, L))


if __name__ == "__main__":
    key = jax.random.PRNGKey(0)
    B, L = 2, 16
    n_head, d_k, d_v, d_model, bottle_neck = 4, 32, 32, 128, 64

    k1, k2, kp = jax.random.split(key, 3)
    dynamic = jax.random.normal(k1, (B, L, bottle_neck), dtype=jnp.float32)
    static = jax.random.normal(k2, (B, L, bottle_neck), dtype=jnp.float32)
    non_pad_mask = jnp.ones((B, L, 1), dtype=jnp.float32).at[1, L - 3:, :].set(0.0)

    params = init_encoder_layer_params(
        kp, n_head=n_head, d_model=d_model, d_k=d_k, d_v=d_v,
        bottle_neck=bottle_neck)

    dyn_out, stat_out, attn = encoder_layer_forward(
        params, dynamic, static, slf_attn_mask=None, non_pad_mask=non_pad_mask,
        diag_mask_flag=True)
    dyn_out, stat_out, attn = jax.block_until_ready((dyn_out, stat_out, attn))

    dyn_ref, stat_ref, attn_ref = encoder_layer_ref(
        params, dynamic, static, non_pad_mask, diag_mask_flag=True)

    assert dyn_out.shape == (B, L, d_model)
    assert stat_out.shape == (B, L, d_model)
    assert attn.shape == (n_head * B, L, L)
    # bf16 MXU operands in both kernel and reference -> a few 1e-3..1e-2 of
    # rounding noise is expected; check within that envelope.
    assert jnp.allclose(attn, attn_ref, atol=2e-2, rtol=2e-2)
    assert jnp.allclose(dyn_out, dyn_ref, atol=3e-2, rtol=3e-2)
    assert jnp.allclose(stat_out, stat_ref, atol=3e-2, rtol=3e-2)

    print("KERNEL_OK")
</pallas_src>

<mosaic_0001>
module attributes {stable_mosaic.version = 11 : i64} {
  func.func @_encoder_layer_kernel(%arg0: i32, %arg1: memref<1x16x64xf32, #tpu.memory_space<vmem>>, %arg2: memref<1x16x64xf32, #tpu.memory_space<vmem>>, %arg3: memref<1x16x1xf32, #tpu.memory_space<vmem>>, %arg4: memref<6x64xf32, #tpu.memory_space<vmem>>, %arg5: memref<64x128xbf16, #tpu.memory_space<vmem>>, %arg6: memref<64x128xbf16, #tpu.memory_space<vmem>>, %arg7: memref<64x128xbf16, #tpu.memory_space<vmem>>, %arg8: memref<128x128xbf16, #tpu.memory_space<vmem>>, %arg9: memref<128x128xbf16, #tpu.memory_space<vmem>>, %arg10: memref<128x128xbf16, #tpu.memory_space<vmem>>, %arg11: memref<4x128xf32, #tpu.memory_space<vmem>>, %arg12: memref<64x128xbf16, #tpu.memory_space<vmem>>, %arg13: memref<128x128xbf16, #tpu.memory_space<vmem>>, %arg14: memref<2x128xf32, #tpu.memory_space<vmem>>, %arg15: memref<1x16x128xf32, #tpu.memory_space<vmem>>, %arg16: memref<1x16x128xf32, #tpu.memory_space<vmem>>, %arg17: memref<4x1x16x16xf32, #tpu.memory_space<vmem>>) attributes {dimension_semantics = [#tpu.dimension_semantics<parallel>], iteration_bounds = array<i64: 2>, scalar_prefetch = 0 : i64, scratch_operands = 0 : i64, tpu.core_type = #tpu.core_type<tc>, window_params = [{transform_indices = @transform_0, window_bounds = array<i64: 1, 16, 64>}, {transform_indices = @transform_1, window_bounds = array<i64: 1, 16, 64>}, {transform_indices = @transform_2, window_bounds = array<i64: 1, 16, 1>}, {pipeline_mode = #tpu.pipeline_mode<synchronous>, transform_indices = @transform_3, window_bounds = array<i64: 6, 64>}, {pipeline_mode = #tpu.pipeline_mode<synchronous>, transform_indices = @transform_4, window_bounds = array<i64: 64, 128>}, {pipeline_mode = #tpu.pipeline_mode<synchronous>, transform_indices = @transform_5, window_bounds = array<i64: 64, 128>}, {pipeline_mode = #tpu.pipeline_mode<synchronous>, transform_indices = @transform_6, window_bounds = array<i64: 64, 128>}, {pipeline_mode = #tpu.pipeline_mode<synchronous>, transform_indices = @transform_7, window_bounds = array<i64: 128, 128>}, {pipeline_mode = #tpu.pipeline_mode<synchronous>, transform_indices = @transform_8, window_bounds = array<i64: 128, 128>}, {pipeline_mode = #tpu.pipeline_mode<synchronous>, transform_indices = @transform_9, window_bounds = array<i64: 128, 128>}, {pipeline_mode = #tpu.pipeline_mode<synchronous>, transform_indices = @transform_10, window_bounds = array<i64: 4, 128>}, {pipeline_mode = #tpu.pipeline_mode<synchronous>, transform_indices = @transform_11, window_bounds = array<i64: 64, 128>}, {pipeline_mode = #tpu.pipeline_mode<synchronous>, transform_indices = @transform_12, window_bounds = array<i64: 128, 128>}, {pipeline_mode = #tpu.pipeline_mode<synchronous>, transform_indices = @transform_13, window_bounds = array<i64: 2, 128>}, {transform_indices = @transform_14, window_bounds = array<i64: 1, 16, 128>}, {transform_indices = @transform_15, window_bounds = array<i64: 1, 16, 128>}, {transform_indices = @transform_16, window_bounds = array<i64: 4, 1, 16, 16>}]} {
    %c0 = arith.constant 0 : index
    %c0_0 = arith.constant 0 : index
    %c0_1 = arith.constant 0 : index
    %0 = vector.load %arg1[%c0, %c0_0, %c0_1] : memref<1x16x64xf32, #tpu.memory_space<vmem>>, vector<1x16x64xf32>
    %1 = vector.shape_cast %0 : vector<1x16x64xf32> to vector<16x64xf32>
    %c0_2 = arith.constant 0 : index
    %c0_3 = arith.constant 0 : index
    %c0_4 = arith.constant 0 : index
    %2 = vector.load %arg2[%c0_2, %c0_3, %c0_4] : memref<1x16x64xf32, #tpu.memory_space<vmem>>, vector<1x16x64xf32>
    %3 = vector.shape_cast %2 : vector<1x16x64xf32> to vector<16x64xf32>
    %c0_5 = arith.constant 0 : index
    %c0_6 = arith.constant 0 : index
    %c0_7 = arith.constant 0 : index
    %4 = vector.load %arg3[%c0_5, %c0_6, %c0_7] : memref<1x16x1xf32, #tpu.memory_space<vmem>>, vector<1x16x1xf32>
    %5 = vector.shape_cast %4 : vector<1x16x1xf32> to vector<16x1xf32>
    %cst = arith.constant dense<0.000000e+00> : vector<16xf32>
    %6 = vector.multi_reduction <add>, %1, %cst [1] : vector<16x64xf32> to vector<16xf32>
    %7 = vector.shape_cast %6 : vector<16xf32> to vector<16x1xf32>
    %cst_8 = arith.constant 6.400000e+01 : f32
    %8 = vector.broadcast %cst_8 : f32 to vector<16x1xf32>
    %9 = arith.divf %7, %8 : vector<16x1xf32>
    %10 = vector.broadcast %9 : vector<16x1xf32> to vector<16x64xf32>
    %11 = arith.subf %1, %10 : vector<16x64xf32>
    %12 = arith.mulf %11, %11 : vector<16x64xf32>
    %cst_9 = arith.constant dense<0.000000e+00> : vector<16xf32>
    %13 = vector.multi_reduction <add>, %12, %cst_9 [1] : vector<16x64xf32> to vector<16xf32>
    %14 = vector.shape_cast %13 : vector<16xf32> to vector<16x1xf32>
    %cst_10 = arith.constant 6.400000e+01 : f32
    %15 = vector.broadcast %cst_10 : f32 to vector<16x1xf32>
    %16 = arith.divf %14, %15 : vector<16x1xf32>
    %17 = vector.broadcast %9 : vector<16x1xf32> to vector<16x64xf32>
    %18 = arith.subf %1, %17 : vector<16x64xf32>
    %cst_11 = arith.constant 9.99999974E-6 : f32
    %19 = vector.broadcast %cst_11 : f32 to vector<16x1xf32>
    %20 = arith.addf %16, %19 : vector<16x1xf32>
    %21 = math.rsqrt %20 : vector<16x1xf32>
    %22 = vector.broadcast %21 : vector<16x1xf32> to vector<16x64xf32>
    %23 = arith.mulf %18, %22 : vector<16x64xf32>
    %cst_12 = arith.constant dense<0.000000e+00> : vector<16xf32>
    %24 = vector.multi_reduction <add>, %3, %cst_12 [1] : vector<16x64xf32> to vector<16xf32>
    %25 = vector.shape_cast %24 : vector<16xf32> to vector<16x1xf32>
    %cst_13 = arith.constant 6.400000e+01 : f32
    %26 = vector.broadcast %cst_13 : f32 to vector<16x1xf32>
    %27 = arith.divf %25, %26 : vector<16x1xf32>
    %28 = vector.broadcast %27 : vector<16x1xf32> to vector<16x64xf32>
    %29 = arith.subf %3, %28 : vector<16x64xf32>
    %30 = arith.mulf %29, %29 : vector<16x64xf32>
    %cst_14 = arith.constant dense<0.000000e+00> : vector<16xf32>
    %31 = vector.multi_reduction <add>, %30, %cst_14 [1] : vector<16x64xf32> to vector<16xf32>
    %32 = vector.shape_cast %31 : vector<16xf32> to vector<16x1xf32>
    %cst_15 = arith.constant 6.400000e+01 : f32
    %33 = vector.broadcast %cst_15 : f32 to vector<16x1xf32>
    %34 = arith.divf %32, %33 : vector<16x1xf32>
    %35 = vector.broadcast %27 : vector<16x1xf32> to vector<16x64xf32>
    %36 = arith.subf %3, %35 : vector<16x64xf32>
    %cst_16 = arith.constant 9.99999974E-6 : f32
    %37 = vector.broadcast %cst_16 : f32 to vector<16x1xf32>
    %38 = arith.addf %34, %37 : vector<16x1xf32>
    %39 = math.rsqrt %38 : vector<16x1xf32>
    %40 = vector.broadcast %39 : vector<16x1xf32> to vector<16x64xf32>
    %41 = arith.mulf %36, %40 : vector<16x64xf32>
    %c0_17 = arith.constant 0 : index
    %c0_18 = arith.constant 0 : index
    %42 = vector.load %arg4[%c0_17, %c0_18] : memref<6x64xf32, #tpu.memory_space<vmem>>, vector<1x64xf32>
    %43 = vector.broadcast %42 : vector<1x64xf32> to vector<16x64xf32>
    %44 = arith.mulf %23, %43 : vector<16x64xf32>
    %c1 = arith.constant 1 : index
    %c0_19 = arith.constant 0 : index
    %45 = vector.load %arg4[%c1, %c0_19] : memref<6x64xf32, #tpu.memory_space<vmem>>, vector<1x64xf32>
    %46 = vector.broadcast %45 : vector<1x64xf32> to vector<16x64xf32>
    %47 = arith.addf %44, %46 : vector<16x64xf32>
    %c2 = arith.constant 2 : index
    %c0_20 = arith.constant 0 : index
    %48 = vector.load %arg4[%c2, %c0_20] : memref<6x64xf32, #tpu.memory_space<vmem>>, vector<1x64xf32>
    %49 = vector.broadcast %48 : vector<1x64xf32> to vector<16x64xf32>
    %50 = arith.mulf %23, %49 : vector<16x64xf32>
    %c3 = arith.constant 3 : index
    %c0_21 = arith.constant 0 : index
    %51 = vector.load %arg4[%c3, %c0_21] : memref<6x64xf32, #tpu.memory_space<vmem>>, vector<1x64xf32>
    %52 = vector.broadcast %51 : vector<1x64xf32> to vector<16x64xf32>
    %53 = arith.addf %50, %52 : vector<16x64xf32>
    %c4 = arith.constant 4 : index
    %c0_22 = arith.constant 0 : index
    %54 = vector.load %arg4[%c4, %c0_22] : memref<6x64xf32, #tpu.memory_space<vmem>>, vector<1x64xf32>
    %55 = vector.broadcast %54 : vector<1x64xf32> to vector<16x64xf32>
    %56 = arith.mulf %41, %55 : vector<16x64xf32>
    %c5 = arith.constant 5 : index
    %c0_23 = arith.constant 0 : index
    %57 = vector.load %arg4[%c5, %c0_23] : memref<6x64xf32, #tpu.memory_space<vmem>>, vector<1x64xf32>
    %58 = vector.broadcast %57 : vector<1x64xf32> to vector<16x64xf32>
    %59 = arith.addf %56, %58 : vector<16x64xf32>
    %60 = arith.truncf %47 : vector<16x64xf32> to vector<16x64xbf16>
    %c0_24 = arith.constant 0 : index
    %c0_25 = arith.constant 0 : index
    %61 = vector.load %arg5[%c0_24, %c0_25] : memref<64x128xbf16, #tpu.memory_space<vmem>>, vector<64x128xbf16>
    %cst_26 = arith.constant dense<0.000000e+00> : vector<16x128xf32>
    %62 = tpu.matmul %60, %61, %cst_26 {dimension_numbers = #tpu.dot_dimension_numbers<[1], [0], [0], [1], [0, 0, 1, 1], [], []>} : vector<16x64xbf16>, vector<64x128xbf16>, vector<16x128xf32> -> vector<16x128xf32>
    %cst_27 = arith.constant 0.176776692 : f32
    %63 = vector.broadcast %cst_27 : f32 to vector<16x128xf32>
    %64 = arith.mulf %62, %63 : vector<16x128xf32>
    %65 = arith.truncf %53 : vector<16x64xf32> to vector<16x64xbf16>
    %c0_28 = arith.constant 0 : index
    %c0_29 = arith.constant 0 : index
    %66 = vector.load %arg6[%c0_28, %c0_29] : memref<64x128xbf16, #tpu.memory_space<vmem>>, vector<64x128xbf16>
    %cst_30 = arith.constant dense<0.000000e+00> : vector<16x128xf32>
    %67 = tpu.matmul %65, %66, %cst_30 {dimension_numbers = #tpu.dot_dimension_numbers<[1], [0], [0], [1], [0, 0, 1, 1], [], []>} : vector<16x64xbf16>, vector<64x128xbf16>, vector<16x128xf32> -> vector<16x128xf32>
    %68 = arith.truncf %59 : vector<16x64xf32> to vector<16x64xbf16>
    %c0_31 = arith.constant 0 : index
    %c0_32 = arith.constant 0 : index
    %69 = vector.load %arg7[%c0_31, %c0_32] : memref<64x128xbf16, #tpu.memory_space<vmem>>, vector<64x128xbf16>
    %cst_33 = arith.constant dense<0.000000e+00> : vector<16x128xf32>
    %70 = tpu.matmul %68, %69, %cst_33 {dimension_numbers = #tpu.dot_dimension_numbers<[1], [0], [0], [1], [0, 0, 1, 1], [], []>} : vector<16x64xbf16>, vector<64x128xbf16>, vector<16x128xf32> -> vector<16x128xf32>
    %71 = tpu.iota {dimensions = array<i32: 0>} : vector<16x16xi32>
    %72 = tpu.iota {dimensions = array<i32: 1>} : vector<16x16xi32>
    %73 = arith.cmpi eq, %71, %72 : vector<16x16xi32>
    %74 = vector.extract_strided_slice %64 {offsets = [0, 0], sizes = [16, 32], strides = [1, 1]} : vector<16x128xf32> to vector<16x32xf32>
    %75 = arith.truncf %74 : vector<16x32xf32> to vector<16x32xbf16>
    %76 = vector.extract_strided_slice %67 {offsets = [0, 0], sizes = [16, 32], strides = [1, 1]} : vector<16x128xf32> to vector<16x32xf32>
    %77 = arith.truncf %76 : vector<16x32xf32> to vector<16x32xbf16>
    %78 = vector.extract_strided_slice %70 {offsets = [0, 0], sizes = [16, 32], strides = [1, 1]} : vector<16x128xf32> to vector<16x32xf32>
    %79 = arith.truncf %78 : vector<16x32xf32> to vector<16x32xbf16>
    %cst_34 = arith.constant dense<0.000000e+00> : vector<16x16xf32>
    %80 = tpu.matmul %75, %77, %cst_34 {dimension_numbers = #tpu.dot_dimension_numbers<[1], [1], [0], [0], [0, 0, 1, 0], [], []>} : vector<16x32xbf16>, vector<16x32xbf16>, vector<16x16xf32> -> vector<16x16xf32>
    %cst_35 = arith.constant -1.000000e+32 : f32
    %81 = vector.broadcast %cst_35 : f32 to vector<16x16xf32>
    %82 = arith.select %73, %81, %80 : vector<16x16xi1>, vector<16x16xf32>
    %cst_36 = arith.constant dense<0xFF800000> : vector<16xf32>
    %83 = vector.multi_reduction <maximumf>, %82, %cst_36 [1] : vector<16x16xf32> to vector<16xf32>
    %84 = vector.shape_cast %83 : vector<16xf32> to vector<16x1xf32>
    %85 = vector.broadcast %84 : vector<16x1xf32> to vector<16x16xf32>
    %86 = arith.subf %82, %85 : vector<16x16xf32>
    %87 = math.exp %86 : vector<16x16xf32>
    %cst_37 = arith.constant dense<0.000000e+00> : vector<16xf32>
    %88 = vector.multi_reduction <add>, %87, %cst_37 [1] : vector<16x16xf32> to vector<16xf32>
    %89 = vector.shape_cast %88 : vector<16xf32> to vector<16x1xf32>
    %90 = tpu.reciprocal %89 {approx = true} : vector<16x1xf32> -> vector<16x1xf32>
    %91 = vector.broadcast %90 : vector<16x1xf32> to vector<16x16xf32>
    %92 = arith.mulf %87, %91 : vector<16x16xf32>
    %c0_38 = arith.constant 0 : index
    %c0_39 = arith.constant 0 : index
    %c0_40 = arith.constant 0 : index
    %c0_41 = arith.constant 0 : index
    %93 = vector.load %arg17[%c0_38, %c0_39, %c0_40, %c0_41] : memref<4x1x16x16xf32, #tpu.memory_space<vmem>>, vector<1x1x16x16xf32>
    %94 = vector.shape_cast %93 : vector<1x1x16x16xf32> to vector<16x16xf32>
    %95 = vector.shape_cast %92 : vector<16x16xf32> to vector<1x1x16x16xf32>
    tpu.vector_store %arg17[%c0_38, %c0_39, %c0_40, %c0_41], %95 {strides = array<i32>} : memref<4x1x16x16xf32, #tpu.memory_space<vmem>>, vector<1x1x16x16xf32>,
    %96 = arith.truncf %92 : vector<16x16xf32> to vector<16x16xbf16>
    %cst_42 = arith.constant dense<0.000000e+00> : vector<16x32xf32>
    %97 = tpu.matmul %96, %79, %cst_42 {dimension_numbers = #tpu.dot_dimension_numbers<[1], [0], [0], [1], [0, 0, 1, 1], [], []>} : vector<16x16xbf16>, vector<16x32xbf16>, vector<16x32xf32> -> vector<16x32xf32>
    %98 = vector.extract_strided_slice %64 {offsets = [0, 32], sizes = [16, 32], strides = [1, 1]} : vector<16x128xf32> to vector<16x32xf32>
    %99 = arith.truncf %98 : vector<16x32xf32> to vector<16x32xbf16>
    %100 = vector.extract_strided_slice %67 {offsets = [0, 32], sizes = [16, 32], strides = [1, 1]} : vector<16x128xf32> to vector<16x32xf32>
    %101 = arith.truncf %100 : vector<16x32xf32> to vector<16x32xbf16>
    %102 = vector.extract_strided_slice %70 {offsets = [0, 32], sizes = [16, 32], strides = [1, 1]} : vector<16x128xf32> to vector<16x32xf32>
    %103 = arith.truncf %102 : vector<16x32xf32> to vector<16x32xbf16>
    %cst_43 = arith.constant dense<0.000000e+00> : vector<16x16xf32>
    %104 = tpu.matmul %99, %101, %cst_43 {dimension_numbers = #tpu.dot_dimension_numbers<[1], [1], [0], [0], [0, 0, 1, 0], [], []>} : vector<16x32xbf16>, vector<16x32xbf16>, vector<16x16xf32> -> vector<16x16xf32>
    %cst_44 = arith.constant -1.000000e+32 : f32
    %105 = vector.broadcast %cst_44 : f32 to vector<16x16xf32>
    %106 = arith.select %73, %105, %104 : vector<16x16xi1>, vector<16x16xf32>
    %cst_45 = arith.constant dense<0xFF800000> : vector<16xf32>
    %107 = vector.multi_reduction <maximumf>, %106, %cst_45 [1] : vector<16x16xf32> to vector<16xf32>
    %108 = vector.shape_cast %107 : vector<16xf32> to vector<16x1xf32>
    %109 = vector.broadcast %108 : vector<16x1xf32> to vector<16x16xf32>
    %110 = arith.subf %106, %109 : vector<16x16xf32>
    %111 = math.exp %110 : vector<16x16xf32>
    %cst_46 = arith.constant dense<0.000000e+00> : vector<16xf32>
    %112 = vector.multi_reduction <add>, %111, %cst_46 [1] : vector<16x16xf32> to vector<16xf32>
    %113 = vector.shape_cast %112 : vector<16xf32> to vector<16x1xf32>
    %114 = tpu.reciprocal %113 {approx = true} : vector<16x1xf32> -> vector<16x1xf32>
    %115 = vector.broadcast %114 : vector<16x1xf32> to vector<16x16xf32>
    %116 = arith.mulf %111, %115 : vector<16x16xf32>
    %c1_47 = arith.constant 1 : index
    %c0_48 = arith.constant 0 : index
    %c0_49 = arith.constant 0 : index
    %c0_50 = arith.constant 0 : index
    %117 = vector.load %arg17[%c1_47, %c0_48, %c0_49, %c0_50] : memref<4x1x16x16xf32, #tpu.memory_space<vmem>>, vector<1x1x16x16xf32>
    %118 = vector.shape_cast %117 : vector<1x1x16x16xf32> to vector<16x16xf32>
    %119 = vector.shape_cast %116 : vector<16x16xf32> to vector<1x1x16x16xf32>
    tpu.vector_store %arg17[%c1_47, %c0_48, %c0_49, %c0_50], %119 {strides = array<i32>} : memref<4x1x16x16xf32, #tpu.memory_space<vmem>>, vector<1x1x16x16xf32>,
    %120 = arith.truncf %116 : vector<16x16xf32> to vector<16x16xbf16>
    %cst_51 = arith.constant dense<0.000000e+00> : vector<16x32xf32>
    %121 = tpu.matmul %120, %103, %cst_51 {dimension_numbers = #tpu.dot_dimension_numbers<[1], [0], [0], [1], [0, 0, 1, 1], [], []>} : vector<16x16xbf16>, vector<16x32xbf16>, vector<16x32xf32> -> vector<16x32xf32>
    %122 = vector.extract_strided_slice %64 {offsets = [0, 64], sizes = [16, 32], strides = [1, 1]} : vector<16x128xf32> to vector<16x32xf32>
    %123 = arith.truncf %122 : vector<16x32xf32> to vector<16x32xbf16>
    %124 = vector.extract_strided_slice %67 {offsets = [0, 64], sizes = [16, 32], strides = [1, 1]} : vector<16x128xf32> to vector<16x32xf32>
    %125 = arith.truncf %124 : vector<16x32xf32> to vector<16x32xbf16>
    %126 = vector.extract_strided_slice %70 {offsets = [0, 64], sizes = [16, 32], strides = [1, 1]} : vector<16x128xf32> to vector<16x32xf32>
    %127 = arith.truncf %126 : vector<16x32xf32> to vector<16x32xbf16>
    %cst_52 = arith.constant dense<0.000000e+00> : vector<16x16xf32>
    %128 = tpu.matmul %123, %125, %cst_52 {dimension_numbers = #tpu.dot_dimension_numbers<[1], [1], [0], [0], [0, 0, 1, 0], [], []>} : vector<16x32xbf16>, vector<16x32xbf16>, vector<16x16xf32> -> vector<16x16xf32>
    %cst_53 = arith.constant -1.000000e+32 : f32
    %129 = vector.broadcast %cst_53 : f32 to vector<16x16xf32>
    %130 = arith.select %73, %129, %128 : vector<16x16xi1>, vector<16x16xf32>
    %cst_54 = arith.constant dense<0xFF800000> : vector<16xf32>
    %131 = vector.multi_reduction <maximumf>, %130, %cst_54 [1] : vector<16x16xf32> to vector<16xf32>
    %132 = vector.shape_cast %131 : vector<16xf32> to vector<16x1xf32>
    %133 = vector.broadcast %132 : vector<16x1xf32> to vector<16x16xf32>
    %134 = arith.subf %130, %133 : vector<16x16xf32>
    %135 = math.exp %134 : vector<16x16xf32>
    %cst_55 = arith.constant dense<0.000000e+00> : vector<16xf32>
    %136 = vector.multi_reduction <add>, %135, %cst_55 [1] : vector<16x16xf32> to vector<16xf32>
    %137 = vector.shape_cast %136 : vector<16xf32> to vector<16x1xf32>
    %138 = tpu.reciprocal %137 {approx = true} : vector<16x1xf32> -> vector<16x1xf32>
    %139 = vector.broadcast %138 : vector<16x1xf32> to vector<16x16xf32>
    %140 = arith.mulf %135, %139 : vector<16x16xf32>
    %c2_56 = arith.constant 2 : index
    %c0_57 = arith.constant 0 : index
    %c0_58 = arith.constant 0 : index
    %c0_59 = arith.constant 0 : index
    %141 = vector.load %arg17[%c2_56, %c0_57, %c0_58, %c0_59] : memref<4x1x16x16xf32, #tpu.memory_space<vmem>>, vector<1x1x16x16xf32>
    %142 = vector.shape_cast %141 : vector<1x1x16x16xf32> to vector<16x16xf32>
    %143 = vector.shape_cast %140 : vector<16x16xf32> to vector<1x1x16x16xf32>
    tpu.vector_store %arg17[%c2_56, %c0_57, %c0_58, %c0_59], %143 {strides = array<i32>} : memref<4x1x16x16xf32, #tpu.memory_space<vmem>>, vector<1x1x16x16xf32>,
    %144 = arith.truncf %140 : vector<16x16xf32> to vector<16x16xbf16>
    %cst_60 = arith.constant dense<0.000000e+00> : vector<16x32xf32>
    %145 = tpu.matmul %144, %127, %cst_60 {dimension_numbers = #tpu.dot_dimension_numbers<[1], [0], [0], [1], [0, 0, 1, 1], [], []>} : vector<16x16xbf16>, vector<16x32xbf16>, vector<16x32xf32> -> vector<16x32xf32>
    %146 = vector.extract_strided_slice %64 {offsets = [0, 96], sizes = [16, 32], strides = [1, 1]} : vector<16x128xf32> to vector<16x32xf32>
    %147 = arith.truncf %146 : vector<16x32xf32> to vector<16x32xbf16>
    %148 = vector.extract_strided_slice %67 {offsets = [0, 96], sizes = [16, 32], strides = [1, 1]} : vector<16x128xf32> to vector<16x32xf32>
    %149 = arith.truncf %148 : vector<16x32xf32> to vector<16x32xbf16>
    %150 = vector.extract_strided_slice %70 {offsets = [0, 96], sizes = [16, 32], strides = [1, 1]} : vector<16x128xf32> to vector<16x32xf32>
    %151 = arith.truncf %150 : vector<16x32xf32> to vector<16x32xbf16>
    %cst_61 = arith.constant dense<0.000000e+00> : vector<16x16xf32>
    %152 = tpu.matmul %147, %149, %cst_61 {dimension_numbers = #tpu.dot_dimension_numbers<[1], [1], [0], [0], [0, 0, 1, 0], [], []>} : vector<16x32xbf16>, vector<16x32xbf16>, vector<16x16xf32> -> vector<16x16xf32>
    %cst_62 = arith.constant -1.000000e+32 : f32
    %153 = vector.broadcast %cst_62 : f32 to vector<16x16xf32>
    %154 = arith.select %73, %153, %152 : vector<16x16xi1>, vector<16x16xf32>
    %cst_63 = arith.constant dense<0xFF800000> : vector<16xf32>
    %155 = vector.multi_reduction <maximumf>, %154, %cst_63 [1] : vector<16x16xf32> to vector<16xf32>
    %156 = vector.shape_cast %155 : vector<16xf32> to vector<16x1xf32>
    %157 = vector.broadcast %156 : vector<16x1xf32> to vector<16x16xf32>
    %158 = arith.subf %154, %157 : vector<16x16xf32>
    %159 = math.exp %158 : vector<16x16xf32>
    %cst_64 = arith.constant dense<0.000000e+00> : vector<16xf32>
    %160 = vector.multi_reduction <add>, %159, %cst_64 [1] : vector<16x16xf32> to vector<16xf32>
    %161 = vector.shape_cast %160 : vector<16xf32> to vector<16x1xf32>
    %162 = tpu.reciprocal %161 {approx = true} : vector<16x1xf32> -> vector<16x1xf32>
    %163 = vector.broadcast %162 : vector<16x1xf32> to vector<16x16xf32>
    %164 = arith.mulf %159, %163 : vector<16x16xf32>
    %c3_65 = arith.constant 3 : index
    %c0_66 = arith.constant 0 : index
    %c0_67 = arith.constant 0 : index
    %c0_68 = arith.constant 0 : index
    %165 = vector.load %arg17[%c3_65, %c0_66, %c0_67, %c0_68] : memref<4x1x16x16xf32, #tpu.memory_space<vmem>>, vector<1x1x16x16xf32>
    %166 = vector.shape_cast %165 : vector<1x1x16x16xf32> to vector<16x16xf32>
    %167 = vector.shape_cast %164 : vector<16x16xf32> to vector<1x1x16x16xf32>
    tpu.vector_store %arg17[%c3_65, %c0_66, %c0_67, %c0_68], %167 {strides = array<i32>} : memref<4x1x16x16xf32, #tpu.memory_space<vmem>>, vector<1x1x16x16xf32>,
    %168 = arith.truncf %164 : vector<16x16xf32> to vector<16x16xbf16>
    %cst_69 = arith.constant dense<0.000000e+00> : vector<16x32xf32>
    %169 = tpu.matmul %168, %151, %cst_69 {dimension_numbers = #tpu.dot_dimension_numbers<[1], [0], [0], [1], [0, 0, 1, 1], [], []>} : vector<16x16xbf16>, vector<16x32xbf16>, vector<16x32xf32> -> vector<16x32xf32>
    %170 = tpu.concatenate %97, %121, %145, %169 in 1 : vector<16x32xf32>, vector<16x32xf32>, vector<16x32xf32>, vector<16x32xf32> -> vector<16x128xf32>
    %171 = vector.shape_cast %5 : vector<16x1xf32> to vector<16x1xf32>
    %172 = vector.broadcast %171 : vector<16x1xf32> to vector<16x128xf32>
    %173 = arith.truncf %170 : vector<16x128xf32> to vector<16x128xbf16>
    %c0_70 = arith.constant 0 : index
    %c0_71 = arith.constant 0 : index
    %174 = vector.load %arg8[%c0_70, %c0_71] : memref<128x128xbf16, #tpu.memory_space<vmem>>, vector<128x128xbf16>
    %cst_72 = arith.constant dense<0.000000e+00> : vector<16x128xf32>
    %175 = tpu.matmul %173, %174, %cst_72 {dimension_numbers = #tpu.dot_dimension_numbers<[1], [0], [0], [1], [0, 0, 1, 1], [], []>} : vector<16x128xbf16>, vector<128x128xbf16>, vector<16x128xf32> -> vector<16x128xf32>
    %176 = arith.mulf %175, %172 : vector<16x128xf32>
    %177 = arith.truncf %176 : vector<16x128xf32> to vector<16x128xbf16>
    %c0_73 = arith.constant 0 : index
    %c0_74 = arith.constant 0 : index
    %178 = vector.load %arg9[%c0_73, %c0_74] : memref<128x128xbf16, #tpu.memory_space<vmem>>, vector<128x128xbf16>
    %cst_75 = arith.constant dense<0.000000e+00> : vector<16x128xf32>
    %179 = tpu.matmul %177, %178, %cst_75 {dimension_numbers = #tpu.dot_dimension_numbers<[1], [0], [0], [1], [0, 0, 1, 1], [], []>} : vector<16x128xbf16>, vector<128x128xbf16>, vector<16x128xf32> -> vector<16x128xf32>
    %c0_76 = arith.constant 0 : index
    %c0_77 = arith.constant 0 : index
    %180 = vector.load %arg11[%c0_76, %c0_77] : memref<4x128xf32, #tpu.memory_space<vmem>>, vector<1x128xf32>
    %181 = vector.broadcast %180 : vector<1x128xf32> to vector<16x128xf32>
    %182 = arith.addf %179, %181 : vector<16x128xf32>
    %183 = math.tanh %182 : vector<16x128xf32>
    %184 = arith.truncf %183 : vector<16x128xf32> to vector<16x128xbf16>
    %c0_78 = arith.constant 0 : index
    %c0_79 = arith.constant 0 : index
    %185 = vector.load %arg10[%c0_78, %c0_79] : memref<128x128xbf16, #tpu.memory_space<vmem>>, vector<128x128xbf16>
    %cst_80 = arith.constant dense<0.000000e+00> : vector<16x128xf32>
    %186 = tpu.matmul %184, %185, %cst_80 {dimension_numbers = #tpu.dot_dimension_numbers<[1], [0], [0], [1], [0, 0, 1, 1], [], []>} : vector<16x128xbf16>, vector<128x128xbf16>, vector<16x128xf32> -> vector<16x128xf32>
    %c1_81 = arith.constant 1 : index
    %c0_82 = arith.constant 0 : index
    %187 = vector.load %arg11[%c1_81, %c0_82] : memref<4x128xf32, #tpu.memory_space<vmem>>, vector<1x128xf32>
    %188 = vector.broadcast %187 : vector<1x128xf32> to vector<16x128xf32>
    %189 = arith.addf %186, %188 : vector<16x128xf32>
    %190 = arith.addf %189, %176 : vector<16x128xf32>
    %cst_83 = arith.constant dense<0.000000e+00> : vector<16xf32>
    %191 = vector.multi_reduction <add>, %190, %cst_83 [1] : vector<16x128xf32> to vector<16xf32>
    %192 = vector.shape_cast %191 : vector<16xf32> to vector<16x1xf32>
    %cst_84 = arith.constant 1.280000e+02 : f32
    %193 = vector.broadcast %cst_84 : f32 to vector<16x1xf32>
    %194 = arith.divf %192, %193 : vector<16x1xf32>
    %195 = vector.broadcast %194 : vector<16x1xf32> to vector<16x128xf32>
    %196 = arith.subf %190, %195 : vector<16x128xf32>
    %197 = arith.mulf %196, %196 : vector<16x128xf32>
    %cst_85 = arith.constant dense<0.000000e+00> : vector<16xf32>
    %198 = vector.multi_reduction <add>, %197, %cst_85 [1] : vector<16x128xf32> to vector<16xf32>
    %199 = vector.shape_cast %198 : vector<16xf32> to vector<16x1xf32>
    %cst_86 = arith.constant 1.280000e+02 : f32
    %200 = vector.broadcast %cst_86 : f32 to vector<16x1xf32>
    %201 = arith.divf %199, %200 : vector<16x1xf32>
    %202 = vector.broadcast %194 : vector<16x1xf32> to vector<16x128xf32>
    %203 = arith.subf %190, %202 : vector<16x128xf32>
    %cst_87 = arith.constant 9.99999974E-6 : f32
    %204 = vector.broadcast %cst_87 : f32 to vector<16x1xf32>
    %205 = arith.addf %201, %204 : vector<16x1xf32>
    %206 = math.rsqrt %205 : vector<16x1xf32>
    %207 = vector.broadcast %206 : vector<16x1xf32> to vector<16x128xf32>
    %208 = arith.mulf %203, %207 : vector<16x128xf32>
    %c2_88 = arith.constant 2 : index
    %c0_89 = arith.constant 0 : index
    %209 = vector.load %arg11[%c2_88, %c0_89] : memref<4x128xf32, #tpu.memory_space<vmem>>, vector<1x128xf32>
    %210 = vector.broadcast %209 : vector<1x128xf32> to vector<16x128xf32>
    %211 = arith.mulf %208, %210 : vector<16x128xf32>
    %c3_90 = arith.constant 3 : index
    %c0_91 = arith.constant 0 : index
    %212 = vector.load %arg11[%c3_90, %c0_91] : memref<4x128xf32, #tpu.memory_space<vmem>>, vector<1x128xf32>
    %213 = vector.broadcast %212 : vector<1x128xf32> to vector<16x128xf32>
    %214 = arith.addf %211, %213 : vector<16x128xf32>
    %215 = arith.mulf %214, %172 : vector<16x128xf32>
    %c0_92 = arith.constant 0 : index
    %c0_93 = arith.constant 0 : index
    %c0_94 = arith.constant 0 : index
    %216 = vector.load %arg15[%c0_92, %c0_93, %c0_94] : memref<1x16x128xf32, #tpu.memory_space<vmem>>, vector<1x16x128xf32>
    %217 = vector.shape_cast %216 : vector<1x16x128xf32> to vector<16x128xf32>
    %218 = vector.shape_cast %215 : vector<16x128xf32> to vector<1x16x128xf32>
    tpu.vector_store %arg15[%c0_92, %c0_93, %c0_94], %218 {strides = array<i32>} : memref<1x16x128xf32, #tpu.memory_space<vmem>>, vector<1x16x128xf32>,
    %219 = vector.broadcast %5 : vector<16x1xf32> to vector<16x64xf32>
    %220 = arith.mulf %3, %219 : vector<16x64xf32>
    %221 = arith.truncf %220 : vector<16x64xf32> to vector<16x64xbf16>
    %c0_95 = arith.constant 0 : index
    %c0_96 = arith.constant 0 : index
    %222 = vector.load %arg12[%c0_95, %c0_96] : memref<64x128xbf16, #tpu.memory_space<vmem>>, vector<64x128xbf16>
    %cst_97 = arith.constant dense<0.000000e+00> : vector<16x128xf32>
    %223 = tpu.matmul %221, %222, %cst_97 {dimension_numbers = #tpu.dot_dimension_numbers<[1], [0], [0], [1], [0, 0, 1, 1], [], []>} : vector<16x64xbf16>, vector<64x128xbf16>, vector<16x128xf32> -> vector<16x128xf32>
    %c0_98 = arith.constant 0 : index
    %c0_99 = arith.constant 0 : index
    %224 = vector.load %arg14[%c0_98, %c0_99] : memref<2x128xf32, #tpu.memory_space<vmem>>, vector<1x128xf32>
    %225 = vector.broadcast %224 : vector<1x128xf32> to vector<16x128xf32>
    %226 = arith.addf %223, %225 : vector<16x128xf32>
    %227 = math.tanh %226 : vector<16x128xf32>
    %228 = arith.truncf %227 : vector<16x128xf32> to vector<16x128xbf16>
    %c0_100 = arith.constant 0 : index
    %c0_101 = arith.constant 0 : index
    %229 = vector.load %arg13[%c0_100, %c0_101] : memref<128x128xbf16, #tpu.memory_space<vmem>>, vector<128x128xbf16>
    %cst_102 = arith.constant dense<0.000000e+00> : vector<16x128xf32>
    %230 = tpu.matmul %228, %229, %cst_102 {dimension_numbers = #tpu.dot_dimension_numbers<[1], [0], [0], [1], [0, 0, 1, 1], [], []>} : vector<16x128xbf16>, vector<128x128xbf16>, vector<16x128xf32> -> vector<16x128xf32>
    %c1_103 = arith.constant 1 : index
    %c0_104 = arith.constant 0 : index
    %231 = vector.load %arg14[%c1_103, %c0_104] : memref<2x128xf32, #tpu.memory_space<vmem>>, vector<1x128xf32>
    %232 = vector.broadcast %231 : vector<1x128xf32> to vector<16x128xf32>
    %233 = arith.addf %230, %232 : vector<16x128xf32>
    %234 = arith.mulf %233, %172 : vector<16x128xf32>
    %c0_105 = arith.constant 0 : index
    %c0_106 = arith.constant 0 : index
    %c0_107 = arith.constant 0 : index
    %235 = vector.load %arg16[%c0_105, %c0_106, %c0_107] : memref<1x16x128xf32, #tpu.memory_space<vmem>>, vector<1x16x128xf32>
    %236 = vector.shape_cast %235 : vector<1x16x128xf32> to vector<16x128xf32>
    %237 = vector.shape_cast %234 : vector<16x128xf32> to vector<1x16x128xf32>
    tpu.vector_store %arg16[%c0_105, %c0_106, %c0_107], %237 {strides = array<i32>} : memref<1x16x128xf32, #tpu.memory_space<vmem>>, vector<1x16x128xf32>,
    return
  }
  func.func @transform_0(%arg0: i32) -> (i32, i32, i32) {
    %c0_i32 = arith.constant 0 : i32
    %c0_i32_0 = arith.constant 0 : i32
    %c0_i32_1 = arith.constant 0 : i32
    return %arg0, %c0_i32, %c0_i32_0 : i32, i32, i32
  }
  func.func @transform_1(%arg0: i32) -> (i32, i32, i32) {
    %c0_i32 = arith.constant 0 : i32
    %c0_i32_0 = arith.constant 0 : i32
    %c0_i32_1 = arith.constant 0 : i32
    return %arg0, %c0_i32, %c0_i32_0 : i32, i32, i32
  }
  func.func @transform_2(%arg0: i32) -> (i32, i32, i32) {
    %c0_i32 = arith.constant 0 : i32
    %c0_i32_0 = arith.constant 0 : i32
    %c0_i32_1 = arith.constant 0 : i32
    return %arg0, %c0_i32, %c0_i32_0 : i32, i32, i32
  }
  func.func @transform_3(%arg0: i32) -> (i32, i32) {
    %c0_i32 = arith.constant 0 : i32
    %c0_i32_0 = arith.constant 0 : i32
    %c0_i32_1 = arith.constant 0 : i32
    return %c0_i32, %c0_i32_0 : i32, i32
  }
  func.func @transform_4(%arg0: i32) -> (i32, i32) {
    %c0_i32 = arith.constant 0 : i32
    %c0_i32_0 = arith.constant 0 : i32
    %c0_i32_1 = arith.constant 0 : i32
    return %c0_i32, %c0_i32_0 : i32, i32
  }
  func.func @transform_5(%arg0: i32) -> (i32, i32) {
    %c0_i32 = arith.constant 0 : i32
    %c0_i32_0 = arith.constant 0 : i32
    %c0_i32_1 = arith.constant 0 : i32
    return %c0_i32, %c0_i32_0 : i32, i32
  }
  func.func @transform_6(%arg0: i32) -> (i32, i32) {
    %c0_i32 = arith.constant 0 : i32
    %c0_i32_0 = arith.constant 0 : i32
    %c0_i32_1 = arith.constant 0 : i32
    return %c0_i32, %c0_i32_0 : i32, i32
  }
  func.func @transform_7(%arg0: i32) -> (i32, i32) {
    %c0_i32 = arith.constant 0 : i32
    %c0_i32_0 = arith.constant 0 : i32
    %c0_i32_1 = arith.constant 0 : i32
    return %c0_i32, %c0_i32_0 : i32, i32
  }
  func.func @transform_8(%arg0: i32) -> (i32, i32) {
    %c0_i32 = arith.constant 0 : i32
    %c0_i32_0 = arith.constant 0 : i32
    %c0_i32_1 = arith.constant 0 : i32
    return %c0_i32, %c0_i32_0 : i32, i32
  }
  func.func @transform_9(%arg0: i32) -> (i32, i32) {
    %c0_i32 = arith.constant 0 : i32
    %c0_i32_0 = arith.constant 0 : i32
    %c0_i32_1 = arith.constant 0 : i32
    return %c0_i32, %c0_i32_0 : i32, i32
  }
  func.func @transform_10(%arg0: i32) -> (i32, i32) {
    %c0_i32 = arith.constant 0 : i32
    %c0_i32_0 = arith.constant 0 : i32
    %c0_i32_1 = arith.constant 0 : i32
    return %c0_i32, %c0_i32_0 : i32, i32
  }
  func.func @transform_11(%arg0: i32) -> (i32, i32) {
    %c0_i32 = arith.constant 0 : i32
    %c0_i32_0 = arith.constant 0 : i32
    %c0_i32_1 = arith.constant 0 : i32
    return %c0_i32, %c0_i32_0 : i32, i32
  }
  func.func @transform_12(%arg0: i32) -> (i32, i32) {
    %c0_i32 = arith.constant 0 : i32
    %c0_i32_0 = arith.constant 0 : i32
    %c0_i32_1 = arith.constant 0 : i32
    return %c0_i32, %c0_i32_0 : i32, i32
  }
  func.func @transform_13(%arg0: i32) -> (i32, i32) {
    %c0_i32 = arith.constant 0 : i32
    %c0_i32_0 = arith.constant 0 : i32
    %c0_i32_1 = arith.constant 0 : i32
    return %c0_i32, %c0_i32_0 : i32, i32
  }
  func.func @transform_14(%arg0: i32) -> (i32, i32, i32) {
    %c0_i32 = arith.constant 0 : i32
    %c0_i32_0 = arith.constant 0 : i32
    %c0_i32_1 = arith.constant 0 : i32
    return %arg0, %c0_i32, %c0_i32_0 : i32, i32, i32
  }
  func.func @transform_15(%arg0: i32) -> (i32, i32, i32) {
    %c0_i32 = arith.constant 0 : i32
    %c0_i32_0 = arith.constant 0 : i32
    %c0_i32_1 = arith.constant 0 : i32
    return %arg0, %c0_i32, %c0_i32_0 : i32, i32, i32
  }
  func.func @transform_16(%arg0: i32) -> (i32, i32, i32, i32) {
    %c0_i32 = arith.constant 0 : i32
    %c0_i32_0 = arith.constant 0 : i32
    %c0_i32_1 = arith.constant 0 : i32
    %c0_i32_2 = arith.constant 0 : i32
    return %c0_i32, %arg0, %c0_i32_0, %c0_i32_1 : i32, i32, i32, i32
  }
}

</mosaic_0001>

<llo_original>
// kernel: tpu_custom_call.1
$region0: #{tpu_custom_call.1}
  #allocation0 [shape = 'u32[]', space=smem, size = 0x4, offset = 0x4, fixed_abs, tag = 'smem constant byte address 0x4 - core index']
  #allocation1 [shape = 'u32[72,128]{1,0:T(1,128)}', space=vmem, size = 0x9000, scoped, tag = 'internal scratch']
  #allocation23 [shape = 's32[]', space=sflag, size = 0x4, offset = 0, fixed_abs, tag = 'sflag constant byte address 0x0 - dummy sync flag']
  %s0 = inlined_call_operand.vmem [shape: f32[2,16,64], index: 0, kind: input, shape index: {}]
  %s1 = inlined_call_operand.hbm [shape: f32[2,16,64], index: 1, kind: input, shape index: {}]
  %s2 = inlined_call_operand.vmem [shape: f32[2,16,1], index: 2, kind: input, shape index: {}]
  %s3 = inlined_call_operand.hbm [shape: f32[6,64], index: 3, kind: input, shape index: {}]
  %s4 = inlined_call_operand.hbm [shape: bf16[64,128], index: 4, kind: input, shape index: {}]
  %s5 = inlined_call_operand.hbm [shape: bf16[64,128], index: 5, kind: input, shape index: {}]
  %s6 = inlined_call_operand.hbm [shape: bf16[64,128], index: 6, kind: input, shape index: {}]
  %s7 = inlined_call_operand.hbm [shape: bf16[128,128], index: 7, kind: input, shape index: {}]
  %s8 = inlined_call_operand.hbm [shape: bf16[128,128], index: 8, kind: input, shape index: {}]
  %s9 = inlined_call_operand.hbm [shape: bf16[128,128], index: 9, kind: input, shape index: {}]
  %s10 = inlined_call_operand.vmem [shape: f32[4,128], index: 10, kind: input, shape index: {}]
  %s11 = inlined_call_operand.hbm [shape: bf16[64,128], index: 11, kind: input, shape index: {}]
  %s12 = inlined_call_operand.hbm [shape: bf16[128,128], index: 12, kind: input, shape index: {}]
  %s13 = inlined_call_operand.vmem [shape: f32[2,128], index: 13, kind: input, shape index: {}]
  %s14 = inlined_call_operand.hbm [shape: f32[2,16,128], index: 14, kind: output, shape index: {0}]
  %s15 = inlined_call_operand.hbm [shape: f32[2,16,128], index: 15, kind: output, shape index: {1}]
  %s16 = inlined_call_operand.hbm [shape: f32[4,2,16,16], index: 16, kind: output, shape index: {2}]
  %17 = xla_tuple %s14, %s15, %s16
  %s18 = sld [smem:[#allocation0]]
  $region145: #{tpu_custom_call.1} parent=0
    _
  %s20 = ssub.s32 1, %s18
  %s21 = scalar_select 0, %s20, %s18
  $region1: #{tpu_custom_call.1} parent=0
    #allocation2 [shape = 'u8[16384]{0}', space=vmem, size = 0x4000, scoped, tag = 'input window, operand 1']
    #allocation3 [shape = 's32[2]{0}', space=sflag, size = 0x8, scoped, tag = 'scoped memory for tpu_custom_call.1']
    #allocation4 [shape = 's32[2]{0}', space=sflag, size = 0x8, scoped, tag = 'scoped memory for tpu_custom_call.1']
    #allocation5 [shape = 'u8[4096]{0}', space=vmem, size = 0x1000, scoped, tag = 'input window, operand 3, single buffered']
    #allocation6 [shape = 's32[1]{0}', space=sflag, size = 0x4, scoped, tag = 'scoped memory for tpu_custom_call.1']
    #allocation7 [shape = 'u8[16384]{0}', space=vmem, size = 0x4000, scoped, tag = 'input window, operand 4, single buffered']
    #allocation8 [shape = 'u8[16384]{0}', space=vmem, size = 0x4000, scoped, tag = 'input window, operand 5, single buffered']
    #allocation9 [shape = 's32[1]{0}', space=sflag, size = 0x4, scoped, tag = 'scoped memory for tpu_custom_call.1']
    #allocation10 [shape = 'u8[16384]{0}', space=vmem, size = 0x4000, scoped, tag = 'input window, operand 6, single buffered']
    #allocation11 [shape = 'u8[32768]{0}', space=vmem, size = 0x8000, scoped, tag = 'input window, operand 7, single buffered']
    #allocation12 [shape = 's32[1]{0}', space=sflag, size = 0x4, scoped, tag = 'scoped memory for tpu_custom_call.1']
    #allocation13 [shape = 'u8[32768]{0}', space=vmem, size = 0x8000, scoped, tag = 'input window, operand 8, single buffered']
    #allocation14 [shape = 'u8[32768]{0}', space=vmem, size = 0x8000, scoped, tag = 'input window, operand 9, single buffered']
    #allocation15 [shape = 's32[1]{0}', space=sflag, size = 0x4, scoped, tag = 'scoped memory for tpu_custom_call.1']
    #allocation16 [shape = 'u8[16384]{0}', space=vmem, size = 0x4000, scoped, tag = 'input window, operand 11, single buffered']
    #allocation17 [shape = 'u8[32768]{0}', space=vmem, size = 0x8000, scoped, tag = 'input window, operand 12, single buffered']
    #allocation18 [shape = 's32[1]{0}', space=sflag, size = 0x4, scoped, tag = 'scoped memory for tpu_custom_call.1']
    #allocation19 [shape = 'u8[16384]{0}', space=vmem, size = 0x4000, scoped, tag = 'output window, operand 0']
    #allocation20 [shape = 'u8[16384]{0}', space=vmem, size = 0x4000, scoped, tag = 'output window, operand 1']
    #allocation21 [shape = 's32[2]{0}', space=sflag, size = 0x8, scoped, tag = 'scoped memory for tpu_custom_call.1']
    #allocation22 [shape = 'u8[65536]{0}', space=vmem, size = 0x10000, scoped, tag = 'output window, operand 2']
    %22 = vsyncpa [#allocation3], 0
    %s23 = scalar_lea.sflag [#allocation3], 1
    %24 = vsyncpa %s23, 0
    %25 = vsyncpa [#allocation6], 0
    %26 = vsyncpa [#allocation9], 0
    %27 = vsyncpa [#allocation12], 0
    %28 = vsyncpa [#allocation15], 0
    %29 = vsyncpa [#allocation18], 0
    %30 = vsyncpa [#allocation4], 0
    %s31 = scalar_lea.sflag [#allocation4], 1
    %32 = vsyncpa %s31, 0
    %33 = vsyncpa [#allocation21], 0
    %s34 = scalar_lea.sflag [#allocation21], 1
    %35 = vsyncpa %s34, 0
    loop: start=0, step=1, limit=4
    $region2: #{tpu_custom_call.1} parent=1 // loop_pre_header
      _
    $region3: #{tpu_custom_call.1} parent=1 // loop_header
      %s37 = sphi 0, %s41
      %p38 = scmp.ge.s32.totalorder %s37, 4
      %s47 = sphi 0, %s49
      %s50 = sphi 0, %s47
      %s51 = sphi 0, %s50
      %s67 = sphi 0, %s51
      %s73 = sphi 0, %s75
      %s76 = sphi 0, %s73
      %s77 = sphi 0, %s76
      %s93 = sphi 0, %s77
      %s99 = sphi 0, %s101
      %s102 = sphi 0, %s99
      %s103 = sphi 0, %s102
      %s119 = sphi 0, %s103
      %s123 = sphi 0, %s123
      %s125 = sphi 0, %s123
      %s126 = sphi 0, %s125
      %s140 = sphi 0, %s126
      %s144 = sphi 0, %s144
      %s146 = sphi 0, %s144
      %s147 = sphi 0, %s146
      %s161 = sphi 0, %s147
      %s165 = sphi 0, %s165
      %s167 = sphi 0, %s165
      %s168 = sphi 0, %s167
      %s182 = sphi 0, %s168
      %s186 = sphi 0, %s186
      %s188 = sphi 0, %s186
      %s189 = sphi 0, %s188
      %s203 = sphi 0, %s189
      %s207 = sphi 0, %s207
      %s209 = sphi 0, %s207
      %s210 = sphi 0, %s209
      %s224 = sphi 0, %s210
      %s228 = sphi 0, %s228
      %s230 = sphi 0, %s228
      %s231 = sphi 0, %s230
      %s245 = sphi 0, %s231
      %s249 = sphi 0, %s249
      %s251 = sphi 0, %s249
      %s252 = sphi 0, %s251
      %s266 = sphi 0, %s252
      %s270 = sphi 0, %s270
      %s272 = sphi 0, %s270
      %s273 = sphi 0, %s272
      %s287 = sphi 0, %s273
      %s291 = sphi 0, %s291
      %s293 = sphi 0, %s291
      %s294 = sphi 0, %s293
      %s308 = sphi 0, %s294
      %s312 = sphi 0, %s312
      %s314 = sphi 0, %s312
      %s315 = sphi 0, %s314
      %s329 = sphi 0, %s315
      %s333 = sphi 0, %s333
      %s335 = sphi 0, %s333
      %s336 = sphi 0, %s335
      %s350 = sphi 0, %s336
      %s356 = sphi 0, %s358
      %s359 = sphi 0, %s356
      %s360 = sphi 0, %s359
      %s376 = sphi 0, %s360
      %s382 = sphi 0, %s384
      %s385 = sphi 0, %s382
      %s386 = sphi 0, %s385
      %s402 = sphi 0, %s386
      %s408 = sphi 0, %s410
      %s411 = sphi 0, %s408
      %s412 = sphi 0, %s411
      %s428 = sphi 0, %s412
    $region4: #{tpu_custom_call.1} parent=1 // loop_header_branch
      %40 = sbr.rel (%p38) target = $region8
    $region5: #{tpu_custom_call.1} parent=1 // loop_body
      %s42 = ssub.s32 %s37, 1
      %s43 = ssub.s32 %s37, 2
      %s44 = sadd.s32 %s37, 1
      %s45 = ssub.s32 %s37, %s44
      %p46 = scmp.eq.s32.totalorder %s45, 0
      %s48 = sadd.s32 %s47, 1
      %s49 = scalar_select %p46, %s47, %s48
      %p52 = pneg %p46
      %p53 = scmp.eq.s32.totalorder %s37, 1
      %p54 = por %p52, %p53
      %p55 = scmp.ne.s32.totalorder %s47, %s50
      %p56 = scmp.eq.s32.totalorder %s37, 0
      %p57 = por %p55, %p56
      %p58 = scmp.ne.s32.totalorder %s47, %s50
      %p59 = scmp.eq.s32.totalorder %s42, 1
      %p60 = por %p58, %p59
      %p61 = scmp.ne.s32.totalorder %s50, %s51
      %p62 = scmp.eq.s32.totalorder %s42, 0
      %p63 = por %p61, %p62
      %p64 = scmp.ne.s32.totalorder %s50, %s51
      %p65 = scmp.eq.s32.totalorder %s43, 1
      %p66 = por %p64, %p65
      %p68 = scmp.ne.s32.totalorder %s51, %s67
      %p69 = scmp.eq.s32.totalorder %s43, 0
      %p70 = por %p68, %p69
      %s71 = ssub.s32 %s37, %s44
      %p72 = scmp.eq.s32.totalorder %s71, 0
      %s74 = sadd.s32 %s73, 1
      %s75 = scalar_select %p72, %s73, %s74
      %p78 = pneg %p72
      %p79 = scmp.eq.s32.totalorder %s37, 1
      %p80 = por %p78, %p79
      %p81 = scmp.ne.s32.totalorder %s73, %s76
      %p82 = scmp.eq.s32.totalorder %s37, 0
      %p83 = por %p81, %p82
      %p84 = scmp.ne.s32.totalorder %s73, %s76
      %p85 = scmp.eq.s32.totalorder %s42, 1
      %p86 = por %p84, %p85
      %p87 = scmp.ne.s32.totalorder %s76, %s77
      %p88 = scmp.eq.s32.totalorder %s42, 0
      %p89 = por %p87, %p88
      %p90 = scmp.ne.s32.totalorder %s76, %s77
      %p91 = scmp.eq.s32.totalorder %s43, 1
      %p92 = por %p90, %p91
      %p94 = scmp.ne.s32.totalorder %s77, %s93
      %p95 = scmp.eq.s32.totalorder %s43, 0
      %p96 = por %p94, %p95
      %s97 = ssub.s32 %s37, %s44
      %p98 = scmp.eq.s32.totalorder %s97, 0
      %s100 = sadd.s32 %s99, 1
      %s101 = scalar_select %p98, %s99, %s100
      %p104 = pneg %p98
      %p105 = scmp.eq.s32.totalorder %s37, 1
      %p106 = por %p104, %p105
      %p107 = scmp.ne.s32.totalorder %s99, %s102
      %p108 = scmp.eq.s32.totalorder %s37, 0
      %p109 = por %p107, %p108
      %p110 = scmp.ne.s32.totalorder %s99, %s102
      %p111 = scmp.eq.s32.totalorder %s42, 1
      %p112 = por %p110, %p111
      %p113 = scmp.ne.s32.totalorder %s102, %s103
      %p114 = scmp.eq.s32.totalorder %s42, 0
      %p115 = por %p113, %p114
      %p116 = scmp.ne.s32.totalorder %s102, %s103
      %p117 = scmp.eq.s32.totalorder %s43, 1
      %p118 = por %p116, %p117
      %p120 = scmp.ne.s32.totalorder %s103, %s119
      %p121 = scmp.eq.s32.totalorder %s43, 0
      %p122 = por %p120, %p121
      %s124 = sadd.s32 %s123, 1
      %p127 = scmp.eq.s32.totalorder %s37, 1
      %p128 = scmp.ne.s32.totalorder %s123, %s125
      %p129 = scmp.eq.s32.totalorder %s37, 0
      %p130 = por %p128, %p129
      %p131 = scmp.ne.s32.totalorder %s123, %s125
      %p132 = scmp.eq.s32.totalorder %s42, 1
      %p133 = por %p131, %p132
      %p134 = scmp.ne.s32.totalorder %s125, %s126
      %p135 = scmp.eq.s32.totalorder %s42, 0
      %p136 = por %p134, %p135
      %p137 = scmp.ne.s32.totalorder %s125, %s126
      %p138 = scmp.eq.s32.totalorder %s43, 1
      %p139 = por %p137, %p138
      %p141 = scmp.ne.s32.totalorder %s126, %s140
      %p142 = scmp.eq.s32.totalorder %s43, 0
      %p143 = por %p141, %p142
      %s145 = sadd.s32 %s144, 1
      %p148 = scmp.eq.s32.totalorder %s37, 1
      %p149 = scmp.ne.s32.totalorder %s144, %s146
      %p150 = scmp.eq.s32.totalorder %s37, 0
      %p151 = por %p149, %p150
      %p152 = scmp.ne.s32.totalorder %s144, %s146
      %p153 = scmp.eq.s32.totalorder %s42, 1
      %p154 = por %p152, %p153
      %p155 = scmp.ne.s32.totalorder %s146, %s147
      %p156 = scmp.eq.s32.totalorder %s42, 0
      %p157 = por %p155, %p156
      %p158 = scmp.ne.s32.totalorder %s146, %s147
      %p159 = scmp.eq.s32.totalorder %s43, 1
      %p160 = por %p158, %p159
      %p162 = scmp.ne.s32.totalorder %s147, %s161
      %p163 = scmp.eq.s32.totalorder %s43, 0
      %p164 = por %p162, %p163
      %s166 = sadd.s32 %s165, 1
      %p169 = scmp.eq.s32.totalorder %s37, 1
      %p170 = scmp.ne.s32.totalorder %s165, %s167
      %p171 = scmp.eq.s32.totalorder %s37, 0
      %p172 = por %p170, %p171
      %p173 = scmp.ne.s32.totalorder %s165, %s167
      %p174 = scmp.eq.s32.totalorder %s42, 1
      %p175 = por %p173, %p174
      %p176 = scmp.ne.s32.totalorder %s167, %s168
      %p177 = scmp.eq.s32.totalorder %s42, 0
      %p178 = por %p176, %p177
      %p179 = scmp.ne.s32.totalorder %s167, %s168
      %p180 = scmp.eq.s32.totalorder %s43, 1
      %p181 = por %p179, %p180
      %p183 = scmp.ne.s32.totalorder %s168, %s182
      %p184 = scmp.eq.s32.totalorder %s43, 0
      %p185 = por %p183, %p184
      %s187 = sadd.s32 %s186, 1
      %p190 = scmp.eq.s32.totalorder %s37, 1
      %p191 = scmp.ne.s32.totalorder %s186, %s188
      %p192 = scmp.eq.s32.totalorder %s37, 0
      %p193 = por %p191, %p192
      %p194 = scmp.ne.s32.totalorder %s186, %s188
      %p195 = scmp.eq.s32.totalorder %s42, 1
      %p196 = por %p194, %p195
      %p197 = scmp.ne.s32.totalorder %s188, %s189
      %p198 = scmp.eq.s32.totalorder %s42, 0
      %p199 = por %p197, %p198
      %p200 = scmp.ne.s32.totalorder %s188, %s189
      %p201 = scmp.eq.s32.totalorder %s43, 1
      %p202 = por %p200, %p201
      %p204 = scmp.ne.s32.totalorder %s189, %s203
      %p205 = scmp.eq.s32.totalorder %s43, 0
      %p206 = por %p204, %p205
      %s208 = sadd.s32 %s207, 1
      %p211 = scmp.eq.s32.totalorder %s37, 1
      %p212 = scmp.ne.s32.totalorder %s207, %s209
      %p213 = scmp.eq.s32.totalorder %s37, 0
      %p214 = por %p212, %p213
      %p215 = scmp.ne.s32.totalorder %s207, %s209
      %p216 = scmp.eq.s32.totalorder %s42, 1
      %p217 = por %p215, %p216
      %p218 = scmp.ne.s32.totalorder %s209, %s210
      %p219 = scmp.eq.s32.totalorder %s42, 0
      %p220 = por %p218, %p219
      %p221 = scmp.ne.s32.totalorder %s209, %s210
      %p222 = scmp.eq.s32.totalorder %s43, 1
      %p223 = por %p221, %p222
      %p225 = scmp.ne.s32.totalorder %s210, %s224
      %p226 = scmp.eq.s32.totalorder %s43, 0
      %p227 = por %p225, %p226
      %s229 = sadd.s32 %s228, 1
      %p232 = scmp.eq.s32.totalorder %s37, 1
      %p233 = scmp.ne.s32.totalorder %s228, %s230
      %p234 = scmp.eq.s32.totalorder %s37, 0
      %p235 = por %p233, %p234
      %p236 = scmp.ne.s32.totalorder %s228, %s230
      %p237 = scmp.eq.s32.totalorder %s42, 1
      %p238 = por %p236, %p237
      %p239 = scmp.ne.s32.totalorder %s230, %s231
      %p240 = scmp.eq.s32.totalorder %s42, 0
      %p241 = por %p239, %p240
      %p242 = scmp.ne.s32.totalorder %s230, %s231
      %p243 = scmp.eq.s32.totalorder %s43, 1
      %p244 = por %p242, %p243
      %p246 = scmp.ne.s32.totalorder %s231, %s245
      %p247 = scmp.eq.s32.totalorder %s43, 0
      %p248 = por %p246, %p247
      %s250 = sadd.s32 %s249, 1
      %p253 = scmp.eq.s32.totalorder %s37, 1
      %p254 = scmp.ne.s32.totalorder %s249, %s251
      %p255 = scmp.eq.s32.totalorder %s37, 0
      %p256 = por %p254, %p255
      %p257 = scmp.ne.s32.totalorder %s249, %s251
      %p258 = scmp.eq.s32.totalorder %s42, 1
      %p259 = por %p257, %p258
      %p260 = scmp.ne.s32.totalorder %s251, %s252
      %p261 = scmp.eq.s32.totalorder %s42, 0
      %p262 = por %p260, %p261
      %p263 = scmp.ne.s32.totalorder %s251, %s252
      %p264 = scmp.eq.s32.totalorder %s43, 1
      %p265 = por %p263, %p264
      %p267 = scmp.ne.s32.totalorder %s252, %s266
      %p268 = scmp.eq.s32.totalorder %s43, 0
      %p269 = por %p267, %p268
      %s271 = sadd.s32 %s270, 1
      %p274 = scmp.eq.s32.totalorder %s37, 1
      %p275 = scmp.ne.s32.totalorder %s270, %s272
      %p276 = scmp.eq.s32.totalorder %s37, 0
      %p277 = por %p275, %p276
      %p278 = scmp.ne.s32.totalorder %s270, %s272
      %p279 = scmp.eq.s32.totalorder %s42, 1
      %p280 = por %p278, %p279
      %p281 = scmp.ne.s32.totalorder %s272, %s273
      %p282 = scmp.eq.s32.totalorder %s42, 0
      %p283 = por %p281, %p282
      %p284 = scmp.ne.s32.totalorder %s272, %s273
      %p285 = scmp.eq.s32.totalorder %s43, 1
      %p286 = por %p284, %p285
      %p288 = scmp.ne.s32.totalorder %s273, %s287
      %p289 = scmp.eq.s32.totalorder %s43, 0
      %p290 = por %p288, %p289
      %s292 = sadd.s32 %s291, 1
      %p295 = scmp.eq.s32.totalorder %s37, 1
      %p296 = scmp.ne.s32.totalorder %s291, %s293
      %p297 = scmp.eq.s32.totalorder %s37, 0
      %p298 = por %p296, %p297
      %p299 = scmp.ne.s32.totalorder %s291, %s293
      %p300 = scmp.eq.s32.totalorder %s42, 1
      %p301 = por %p299, %p300
      %p302 = scmp.ne.s32.totalorder %s293, %s294
      %p303 = scmp.eq.s32.totalorder %s42, 0
      %p304 = por %p302, %p303
      %p305 = scmp.ne.s32.totalorder %s293, %s294
      %p306 = scmp.eq.s32.totalorder %s43, 1
      %p307 = por %p305, %p306
      %p309 = scmp.ne.s32.totalorder %s294, %s308
      %p310 = scmp.eq.s32.totalorder %s43, 0
      %p311 = por %p309, %p310
      %s313 = sadd.s32 %s312, 1
      %p316 = scmp.eq.s32.totalorder %s37, 1
      %p317 = scmp.ne.s32.totalorder %s312, %s314
      %p318 = scmp.eq.s32.totalorder %s37, 0
      %p319 = por %p317, %p318
      %p320 = scmp.ne.s32.totalorder %s312, %s314
      %p321 = scmp.eq.s32.totalorder %s42, 1
      %p322 = por %p320, %p321
      %p323 = scmp.ne.s32.totalorder %s314, %s315
      %p324 = scmp.eq.s32.totalorder %s42, 0
      %p325 = por %p323, %p324
      %p326 = scmp.ne.s32.totalorder %s314, %s315
      %p327 = scmp.eq.s32.totalorder %s43, 1
      %p328 = por %p326, %p327
      %p330 = scmp.ne.s32.totalorder %s315, %s329
      %p331 = scmp.eq.s32.totalorder %s43, 0
      %p332 = por %p330, %p331
      %s334 = sadd.s32 %s333, 1
      %p337 = scmp.eq.s32.totalorder %s37, 1
      %p338 = scmp.ne.s32.totalorder %s333, %s335
      %p339 = scmp.eq.s32.totalorder %s37, 0
      %p340 = por %p338, %p339
      %p341 = scmp.ne.s32.totalorder %s333, %s335
      %p342 = scmp.eq.s32.totalorder %s42, 1
      %p343 = por %p341, %p342
      %p344 = scmp.ne.s32.totalorder %s335, %s336
      %p345 = scmp.eq.s32.totalorder %s42, 0
      %p346 = por %p344, %p345
      %p347 = scmp.ne.s32.totalorder %s335, %s336
      %p348 = scmp.eq.s32.totalorder %s43, 1
      %p349 = por %p347, %p348
      %p351 = scmp.ne.s32.totalorder %s336, %s350
      %p352 = scmp.eq.s32.totalorder %s43, 0
      %p353 = por %p351, %p352
      %s354 = ssub.s32 %s37, %s44
      %p355 = scmp.eq.s32.totalorder %s354, 0
      %s357 = sadd.s32 %s356, 1
      %s358 = scalar_select %p355, %s356, %s357
      %p361 = pneg %p355
      %p362 = scmp.eq.s32.totalorder %s37, 1
      %p363 = por %p361, %p362
      %p364 = scmp.ne.s32.totalorder %s356, %s359
      %p365 = scmp.eq.s32.totalorder %s37, 0
      %p366 = por %p364, %p365
      %p367 = scmp.ne.s32.totalorder %s356, %s359
      %p368 = scmp.eq.s32.totalorder %s42, 1
      %p369 = por %p367, %p368
      %p370 = scmp.ne.s32.totalorder %s359, %s360
      %p371 = scmp.eq.s32.totalorder %s42, 0
      %p372 = por %p370, %p371
      %p373 = scmp.ne.s32.totalorder %s359, %s360
      %p374 = scmp.eq.s32.totalorder %s43, 1
      %p375 = por %p373, %p374
      %p377 = scmp.ne.s32.totalorder %s360, %s376
      %p378 = scmp.eq.s32.totalorder %s43, 0
      %p379 = por %p377, %p378
      %s380 = ssub.s32 %s37, %s44
      %p381 = scmp.eq.s32.totalorder %s380, 0
      %s383 = sadd.s32 %s382, 1
      %s384 = scalar_select %p381, %s382, %s383
      %p387 = pneg %p381
      %p388 = scmp.eq.s32.totalorder %s37, 1
      %p389 = por %p387, %p388
      %p390 = scmp.ne.s32.totalorder %s382, %s385
      %p391 = scmp.eq.s32.totalorder %s37, 0
      %p392 = por %p390, %p391
      %p393 = scmp.ne.s32.totalorder %s382, %s385
      %p394 = scmp.eq.s32.totalorder %s42, 1
      %p395 = por %p393, %p394
      %p396 = scmp.ne.s32.totalorder %s385, %s386
      %p397 = scmp.eq.s32.totalorder %s42, 0
      %p398 = por %p396, %p397
      %p399 = scmp.ne.s32.totalorder %s385, %s386
      %p400 = scmp.eq.s32.totalorder %s43, 1
      %p401 = por %p399, %p400
      %p403 = scmp.ne.s32.totalorder %s386, %s402
      %p404 = scmp.eq.s32.totalorder %s43, 0
      %p405 = por %p403, %p404
      %s406 = ssub.s32 %s37, %s44
      %p407 = scmp.eq.s32.totalorder %s406, 0
      %s409 = sadd.s32 %s408, 1
      %s410 = scalar_select %p407, %s408, %s409
      %p413 = pneg %p407
      %p414 = scmp.eq.s32.totalorder %s37, 1
      %p415 = por %p413, %p414
      %p416 = scmp.ne.s32.totalorder %s408, %s411
      %p417 = scmp.eq.s32.totalorder %s37, 0
      %p418 = por %p416, %p417
      %p419 = scmp.ne.s32.totalorder %s408, %s411
      %p420 = scmp.eq.s32.totalorder %s42, 1
      %p421 = por %p419, %p420
      %p422 = scmp.ne.s32.totalorder %s411, %s412
      %p423 = scmp.eq.s32.totalorder %s42, 0
      %p424 = por %p422, %p423
      %p425 = scmp.ne.s32.totalorder %s411, %s412
      %p426 = scmp.eq.s32.totalorder %s43, 1
      %p427 = por %p425, %p426
      %p429 = scmp.ne.s32.totalorder %s412, %s428
      %p430 = scmp.eq.s32.totalorder %s43, 0
      %p431 = por %p429, %p430
      %p432 = scmp.le.s32.totalorder 1, %s37
      %p433 = scmp.lt.s32.totalorder %s37, 3
      %p434 = pnand %p432, %p433
      %p435 = pneg %p434
      // Predicated region
      $region9: #{tpu_custom_call.1} parent=5 // pred_check
        _
      $region10: #{tpu_custom_call.1} parent=5 // pred_check_branch
        %437 = sbr.rel (%p434) target = $region12
      $region11: #{tpu_custom_call.1} parent=5 // pred_region
        %s438 = ssub.s32 %s37, 1
        // Predicated region
        $region13: #{tpu_custom_call.1} parent=11 // pred_check
          %p439 = pneg %p136
        $region14: #{tpu_custom_call.1} parent=11 // pred_check_branch
          %441 = sbr.rel (%p439) target = $region16
        $region15: #{tpu_custom_call.1} parent=11 // pred_region
          %443 = vsyncadd [#allocation6], 0
          %s445 = sshll.u32 %s3, 4
          %s446 = int_to_ptr.hbm [resolvable:$true] %s445
          %s447 = sshll.u32 [#allocation5], 4
          %s448 = int_to_ptr.vmem [resolvable:$true] %s447
          %450 = dma.hbm_to_vmem [thread:$0]  %s446, 128, %s448, [#allocation6]
        $region16: #{tpu_custom_call.1} parent=11 // pred_fallthru
          _
        // Predicated region
        $region17: #{tpu_custom_call.1} parent=11 // pred_check
          %p451 = pneg %p157
        $region18: #{tpu_custom_call.1} parent=11 // pred_check_branch
          %453 = sbr.rel (%p451) target = $region20
        $region19: #{tpu_custom_call.1} parent=11 // pred_region
          %455 = vsyncadd [#allocation6], 0
          %s456 = sshll.u32 %s4, 4
          %s457 = int_to_ptr.hbm [resolvable:$true] %s456
          %s458 = sshll.u32 [#allocation7], 4
          %s459 = int_to_ptr.vmem [resolvable:$true] %s458
          %464 = dma.hbm_to_vmem [thread:$0]  %s457, 512, %s459, [#allocation6], 64, 64, 4
        $region20: #{tpu_custom_call.1} parent=11 // pred_fallthru
          _
        // Predicated region
        $region21: #{tpu_custom_call.1} parent=11 // pred_check
          %p465 = pneg %p178
        $region22: #{tpu_custom_call.1} parent=11 // pred_check_branch
          %467 = sbr.rel (%p465) target = $region24
        $region23: #{tpu_custom_call.1} parent=11 // pred_region
          %469 = vsyncadd [#allocation9], 0
          %s470 = sshll.u32 %s5, 4
          %s471 = int_to_ptr.hbm [resolvable:$true] %s470
          %s472 = sshll.u32 [#allocation8], 4
          %s473 = int_to_ptr.vmem [resolvable:$true] %s472
          %478 = dma.hbm_to_vmem [thread:$0]  %s471, 512, %s473, [#allocation9], 64, 64, 4
        $region24: #{tpu_custom_call.1} parent=11 // pred_fallthru
          _
        // Predicated region
        $region25: #{tpu_custom_call.1} parent=11 // pred_check
          %p479 = pneg %p199
        $region26: #{tpu_custom_call.1} parent=11 // pred_check_branch
          %481 = sbr.rel (%p479) target = $region28
        $region27: #{tpu_custom_call.1} parent=11 // pred_region
          %483 = vsyncadd [#allocation9], 0
          %s484 = sshll.u32 %s6, 4
          %s485 = int_to_ptr.hbm [resolvable:$true] %s484
          %s486 = sshll.u32 [#allocation10], 4
          %s487 = int_to_ptr.vmem [resolvable:$true] %s486
          %492 = dma.hbm_to_vmem [thread:$0]  %s485, 512, %s487, [#allocation9], 64, 64, 4
        $region28: #{tpu_custom_call.1} parent=11 // pred_fallthru
          _
        // Predicated region
        $region29: #{tpu_custom_call.1} parent=11 // pred_check
          %p493 = pneg %p220
        $region30: #{tpu_custom_call.1} parent=11 // pred_check_branch
          %495 = sbr.rel (%p493) target = $region32
        $region31: #{tpu_custom_call.1} parent=11 // pred_region
          %497 = vsyncadd [#allocation12], 0
          %s498 = sshll.u32 %s7, 4
          %s499 = int_to_ptr.hbm [resolvable:$true] %s498
          %s500 = sshll.u32 [#allocation11], 4
          %s501 = int_to_ptr.vmem [resolvable:$true] %s500
          %506 = dma.hbm_to_vmem [thread:$0]  %s499, 1024, %s501, [#allocation12], 64, 64, 4
        $region32: #{tpu_custom_call.1} parent=11 // pred_fallthru
          _
        // Predicated region
        $region33: #{tpu_custom_call.1} parent=11 // pred_check
          %p507 = pneg %p241
        $region34: #{tpu_custom_call.1} parent=11 // pred_check_branch
          %509 = sbr.rel (%p507) target = $region36
        $region35: #{tpu_custom_call.1} parent=11 // pred_region
          %511 = vsyncadd [#allocation12], 0
          %s512 = sshll.u32 %s8, 4
          %s513 = int_to_ptr.hbm [resolvable:$true] %s512
          %s514 = sshll.u32 [#allocation13], 4
          %s515 = int_to_ptr.vmem [resolvable:$true] %s514
          %520 = dma.hbm_to_vmem [thread:$0]  %s513, 1024, %s515, [#allocation12], 64, 64, 4
        $region36: #{tpu_custom_call.1} parent=11 // pred_fallthru
          _
        // Predicated region
        $region37: #{tpu_custom_call.1} parent=11 // pred_check
          %p521 = pneg %p262
        $region38: #{tpu_custom_call.1} parent=11 // pred_check_branch
          %523 = sbr.rel (%p521) target = $region40
        $region39: #{tpu_custom_call.1} parent=11 // pred_region
          %525 = vsyncadd [#allocation15], 0
          %s526 = sshll.u32 %s9, 4
          %s527 = int_to_ptr.hbm [resolvable:$true] %s526
          %s528 = sshll.u32 [#allocation14], 4
          %s529 = int_to_ptr.vmem [resolvable:$true] %s528
          %534 = dma.hbm_to_vmem [thread:$0]  %s527, 1024, %s529, [#allocation15], 64, 64, 4
        $region40: #{tpu_custom_call.1} parent=11 // pred_fallthru
          _
        // Predicated region
        $region41: #{tpu_custom_call.1} parent=11 // pred_check
          %p535 = pneg %p283
        $region42: #{tpu_custom_call.1} parent=11 // pred_check_branch
          %537 = sbr.rel (%p535) target = $region44
        $region43: #{tpu_custom_call.1} parent=11 // pred_region
          _
        $region44: #{tpu_custom_call.1} parent=11 // pred_fallthru
          _
        // Predicated region
        $region45: #{tpu_custom_call.1} parent=11 // pred_check
          %p538 = pneg %p304
        $region46: #{tpu_custom_call.1} parent=11 // pred_check_branch
          %540 = sbr.rel (%p538) target = $region48
        $region47: #{tpu_custom_call.1} parent=11 // pred_region
          %542 = vsyncadd [#allocation15], 0
          %s543 = sshll.u32 %s11, 4
          %s544 = int_to_ptr.hbm [resolvable:$true] %s543
          %s545 = sshll.u32 [#allocation16], 4
          %s546 = int_to_ptr.vmem [resolvable:$true] %s545
          %551 = dma.hbm_to_vmem [thread:$0]  %s544, 512, %s546, [#allocation15], 64, 64, 4
        $region48: #{tpu_custom_call.1} parent=11 // pred_fallthru
          _
        // Predicated region
        $region49: #{tpu_custom_call.1} parent=11 // pred_check
          %p552 = pneg %p325
        $region50: #{tpu_custom_call.1} parent=11 // pred_check_branch
          %554 = sbr.rel (%p552) target = $region52
        $region51: #{tpu_custom_call.1} parent=11 // pred_region
          %556 = vsyncadd [#allocation18], 0
          %s557 = sshll.u32 %s12, 4
          %s558 = int_to_ptr.hbm [resolvable:$true] %s557
          %s559 = sshll.u32 [#allocation17], 4
          %s560 = int_to_ptr.vmem [resolvable:$true] %s559
          %565 = dma.hbm_to_vmem [thread:$0]  %s558, 1024, %s560, [#allocation18], 64, 64, 4
        $region52: #{tpu_custom_call.1} parent=11 // pred_fallthru
          _
        // Predicated region
        $region53: #{tpu_custom_call.1} parent=11 // pred_check
          %p566 = pneg %p346
        $region54: #{tpu_custom_call.1} parent=11 // pred_check_branch
          %568 = sbr.rel (%p566) target = $region56
        $region55: #{tpu_custom_call.1} parent=11 // pred_region
          _
        $region56: #{tpu_custom_call.1} parent=11 // pred_fallthru
          _
      $region12: #{tpu_custom_call.1} parent=5 // pred_fallthru
        _
      %p569 = scmp.lt.s32.totalorder %s37, 2
      // Predicated region
      $region57: #{tpu_custom_call.1} parent=5 // pred_check
        %p570 = pneg %p569
      $region58: #{tpu_custom_call.1} parent=5 // pred_check_branch
        %572 = sbr.rel (%p570) target = $region60
      $region59: #{tpu_custom_call.1} parent=5 // pred_region
        // Predicated region
        $region61: #{tpu_custom_call.1} parent=59 // pred_check
          %p573 = pneg %p57
        $region62: #{tpu_custom_call.1} parent=59 // pred_check_branch
          %575 = sbr.rel (%p573) target = $region64
        $region63: #{tpu_custom_call.1} parent=59 // pred_region
          %p576 = scmp.lt.s32.totalorder %s37, 1
          %s577 = scalar_select %p576, %s37, 1
          %s578 = smul.addr %s577, 2
          %s579 = smul.addr %s578, 8
          %s580 = scalar_lea.vmem %s0, %s579
        $region64: #{tpu_custom_call.1} parent=59 // pred_fallthru
          _
        // Predicated region
        $region65: #{tpu_custom_call.1} parent=59 // pred_check
          %p581 = pneg %p83
        $region66: #{tpu_custom_call.1} parent=59 // pred_check_branch
          %583 = sbr.rel (%p581) target = $region68
        $region67: #{tpu_custom_call.1} parent=59 // pred_region
          %s584 = sand.u32 %s73, 1
          %s585 = scalar_lea.sflag [#allocation3], %s584
          %s586 = sand.u32 %s73, 1
          %s587 = smul.addr %s586, 16
          %s588 = scalar_lea.vmem [#allocation2], %s587
          %590 = vsyncadd %s585, 0
          %s591 = smul.addr %s37, 2
          %s592 = smul.addr %s591, 8
          %s593 = scalar_lea.hbm %s1, %s592
          %s594 = sshll.u32 %s593, 4
          %s595 = int_to_ptr.hbm [resolvable:$true] %s594
          %s596 = sshll.u32 %s588, 4
          %s597 = int_to_ptr.vmem [resolvable:$true] %s596
          %602 = dma.hbm_to_vmem [thread:$0]  %s595, 256, %s597, %s585, 128, 128, 8
        $region68: #{tpu_custom_call.1} parent=59 // pred_fallthru
          _
        // Predicated region
        $region69: #{tpu_custom_call.1} parent=59 // pred_check
          %p603 = pneg %p109
        $region70: #{tpu_custom_call.1} parent=59 // pred_check_branch
          %605 = sbr.rel (%p603) target = $region72
        $region71: #{tpu_custom_call.1} parent=59 // pred_region
          %p606 = scmp.lt.s32.totalorder %s37, 1
          %s607 = scalar_select %p606, %s37, 1
          %s608 = smul.addr %s607, 2
          %s609 = smul.addr %s608, 8
          %s610 = scalar_lea.vmem %s2, %s609
        $region72: #{tpu_custom_call.1} parent=59 // pred_fallthru
          _
      $region60: #{tpu_custom_call.1} parent=5 // pred_fallthru
        _
      %p611 = scmp.le.s32.totalorder 1, %s37
      %p612 = scmp.lt.s32.totalorder %s37, 3
      %p613 = pnand %p611, %p612
      %p614 = pneg %p613
      // Predicated region
      $region73: #{tpu_custom_call.1} parent=5 // pred_check
        _
      $region74: #{tpu_custom_call.1} parent=5 // pred_check_branch
        %616 = sbr.rel (%p613) target = $region76
      $region75: #{tpu_custom_call.1} parent=5 // pred_region
        %s617 = ssub.s32 %s37, 1
        %s618 = sand.u32 %s76, 1
        %s619 = scalar_lea.sflag [#allocation3], %s618
        %s620 = sand.u32 %s76, 1
        %s621 = smul.addr %s620, 16
        %s622 = scalar_lea.vmem [#allocation2], %s621
        // Predicated region
        $region77: #{tpu_custom_call.1} parent=75 // pred_check
          %p623 = pneg %p89
        $region78: #{tpu_custom_call.1} parent=75 // pred_check_branch
          %625 = sbr.rel (%p623) target = $region80
        $region79: #{tpu_custom_call.1} parent=75 // pred_region
          %627 = dma.done %s619, 256
        $region80: #{tpu_custom_call.1} parent=75 // pred_fallthru
          _
        // Predicated region
        $region81: #{tpu_custom_call.1} parent=75 // pred_check
          %p628 = pneg %p136
        $region82: #{tpu_custom_call.1} parent=75 // pred_check_branch
          %630 = sbr.rel (%p628) target = $region84
        $region83: #{tpu_custom_call.1} parent=75 // pred_region
          %632 = dma.done [#allocation6], 128
        $region84: #{tpu_custom_call.1} parent=75 // pred_fallthru
          _
        // Predicated region
        $region85: #{tpu_custom_call.1} parent=75 // pred_check
          %p633 = pneg %p157
        $region86: #{tpu_custom_call.1} parent=75 // pred_check_branch
          %635 = sbr.rel (%p633) target = $region88
        $region87: #{tpu_custom_call.1} parent=75 // pred_region
          %637 = dma.done [#allocation6], 512
        $region88: #{tpu_custom_call.1} parent=75 // pred_fallthru
          _
        // Predicated region
        $region89: #{tpu_custom_call.1} parent=75 // pred_check
          %p638 = pneg %p178
        $region90: #{tpu_custom_call.1} parent=75 // pred_check_branch
          %640 = sbr.rel (%p638) target = $region92
        $region91: #{tpu_custom_call.1} parent=75 // pred_region
          %642 = dma.done [#allocation9], 512
        $region92: #{tpu_custom_call.1} parent=75 // pred_fallthru
          _
        // Predicated region
        $region93: #{tpu_custom_call.1} parent=75 // pred_check
          %p643 = pneg %p199
        $region94: #{tpu_custom_call.1} parent=75 // pred_check_branch
          %645 = sbr.rel (%p643) target = $region96
        $region95: #{tpu_custom_call.1} parent=75 // pred_region
          %647 = dma.done [#allocation9], 512
        $region96: #{tpu_custom_call.1} parent=75 // pred_fallthru
          _
        // Predicated region
        $region97: #{tpu_custom_call.1} parent=75 // pred_check
          %p648 = pneg %p220
        $region98: #{tpu_custom_call.1} parent=75 // pred_check_branch
          %650 = sbr.rel (%p648) target = $region100
        $region99: #{tpu_custom_call.1} parent=75 // pred_region
          %652 = dma.done [#allocation12], 1024
        $region100: #{tpu_custom_call.1} parent=75 // pred_fallthru
          _
        // Predicated region
        $region101: #{tpu_custom_call.1} parent=75 // pred_check
          %p653 = pneg %p241
        $region102: #{tpu_custom_call.1} parent=75 // pred_check_branch
          %655 = sbr.rel (%p653) target = $region104
        $region103: #{tpu_custom_call.1} parent=75 // pred_region
          %657 = dma.done [#allocation12], 1024
        $region104: #{tpu_custom_call.1} parent=75 // pred_fallthru
          _
        // Predicated region
        $region105: #{tpu_custom_call.1} parent=75 // pred_check
          %p658 = pneg %p262
        $region106: #{tpu_custom_call.1} parent=75 // pred_check_branch
          %660 = sbr.rel (%p658) target = $region108
        $region107: #{tpu_custom_call.1} parent=75 // pred_region
          %662 = dma.done [#allocation15], 1024
        $region108: #{tpu_custom_call.1} parent=75 // pred_fallthru
          _
        // Predicated region
        $region109: #{tpu_custom_call.1} parent=75 // pred_check
          %p663 = pneg %p304
        $region110: #{tpu_custom_call.1} parent=75 // pred_check_branch
          %665 = sbr.rel (%p663) target = $region112
        $region111: #{tpu_custom_call.1} parent=75 // pred_region
          %667 = dma.done [#allocation15], 512
        $region112: #{tpu_custom_call.1} parent=75 // pred_fallthru
          _
        // Predicated region
        $region113: #{tpu_custom_call.1} parent=75 // pred_check
          %p668 = pneg %p325
        $region114: #{tpu_custom_call.1} parent=75 // pred_check_branch
          %670 = sbr.rel (%p668) target = $region116
        $region115: #{tpu_custom_call.1} parent=75 // pred_region
          %672 = dma.done [#allocation18], 1024
        $region116: #{tpu_custom_call.1} parent=75 // pred_fallthru
          _
        %p673 = scmp.lt.s32.totalorder %s42, 1
        %s674 = scalar_select %p673, %s42, 1
        %s675 = smul.addr %s674, 2
        %s676 = smul.addr %s675, 8
        %s677 = scalar_lea.vmem %s0, %s676
        %p678 = pneg %p63
        %p679 = pneg %p60
        %s680 = sand.u32 %s76, 1
        %s681 = scalar_lea.sflag [#allocation3], %s680
        %s682 = sand.u32 %s76, 1
        %s683 = smul.addr %s682, 16
        %s684 = scalar_lea.vmem [#allocation2], %s683
        %p685 = pneg %p89
        %p686 = pneg %p86
        %p687 = scmp.lt.s32.totalorder %s42, 1
        %s688 = scalar_select %p687, %s42, 1
        %s689 = smul.addr %s688, 2
        %s690 = smul.addr %s689, 8
        %s691 = scalar_lea.vmem %s2, %s690
        %p692 = pneg %p115
        %p693 = pneg %p112
        %p694 = pneg %p136
        %p695 = pneg %p133
        %p696 = pneg %p157
        %p697 = pneg %p154
        %p698 = pneg %p178
        %p699 = pneg %p175
        %p700 = pneg %p199
        %p701 = pneg %p196
        %p702 = pneg %p220
        %p703 = pneg %p217
        %p704 = pneg %p241
        %p705 = pneg %p238
        %p706 = pneg %p262
        %p707 = pneg %p259
        %p708 = pneg %p283
        %p709 = pneg %p280
        %p710 = pneg %p304
        %p711 = pneg %p301
        %p712 = pneg %p325
        %p713 = pneg %p322
        %p714 = pneg %p346
        %p715 = pneg %p343
        %p716 = pneg %p372
        %p717 = pneg %p369
        %s718 = sand.u32 %s359, 1
        %s719 = scalar_lea.sflag [#allocation4], %s718
        %s720 = sand.u32 %s359, 1
        %s721 = smul.addr %s720, 16
        %s722 = scalar_lea.vmem [#allocation19], %s721
        %p723 = pneg %p398
        %p724 = pneg %p395
        %s725 = sand.u32 %s42, 1
        %s726 = scalar_lea.sflag [#allocation21], %s725
        %s727 = sand.u32 %s385, 1
        %s728 = smul.addr %s727, 16
        %s729 = scalar_lea.vmem [#allocation20], %s728
        %p730 = pneg %p424
        %p731 = pneg %p421
        %s732 = sand.u32 %s42, 1
        %s733 = scalar_lea.sflag [#allocation21], %s732
        %s734 = sand.u32 %s411, 1
        %s735 = smul.addr %s734, 64
        %s736 = scalar_lea.vmem [#allocation22], %s735
        %p737 = scmp.lt.s32.totalorder %s42, 1
        %s738 = scalar_select %p737, %s42, 1
        %s739 = smul.addr %s738, 2
        %s740 = smul.addr %s739, 8
        %s741 = scalar_lea.vmem %s0, %s740
        %p742 = scmp.lt.s32.totalorder %s42, 1
        %s743 = scalar_select %p742, %s42, 1
        %s744 = smul.addr %s743, 2
        %s745 = smul.addr %s744, 8
        %s746 = scalar_lea.vmem %s2, %s745
        %v748 = vld [vmem:[%s741] sm:$0xff]
        %v749 = vld [vmem:[%s741 + $0x8] sm:$0xff]
        %v750 = vld [vmem:[%s622] sm:$0xff]
        %v751 = vld [vmem:[%s622 + $0x8] sm:$0xff]
        %v752 = vld [vmem:[%s746] sm:$0xff]
        %v753 = vld [vmem:[%s746 + $0x8] sm:$0xff]
        %vm754 = vcmask 523264
        %v755 = vsel %vm754, %v748, 0.0
        %756 = vadd.xlane.f32.xlu0 %v755
        %v757 = vpop.xlane.xlu0 %756
        %v758 = vsel %vm754, %v749, 0.0
        %759 = vadd.xlane.f32.xlu0 %v758
        %v760 = vpop.xlane.xlu0 %759
        %v761 = vrcp.pop 64.0
        %v762 = vmul.f32 64.0, %v761
        %v763 = vsub.f32 1.0, %v762
        %v764 = vmul.f32 %v761, %v763
        %v765 = vadd.f32 %v761, %v764
        %vm766 = vweird.f32 %v761
        %v767 = vsel %vm766, %v761, %v765
        %v768 = vmul.f32 %v757, %v767
        %v769 = vmul.f32 %v760, %v767
        %v770 = vsub.f32 %v748, %v768
        %v771 = vsub.f32 %v749, %v769
        %v772 = vmul.f32 %v770, %v770
        %v773 = vmul.f32 %v771, %v771
        %v774 = vsel %vm754, %v772, 0.0
        %775 = vadd.xlane.f32.xlu0 %v774
        %v776 = vpop.xlane.xlu0 %775
        %v777 = vsel %vm754, %v773, 0.0
        %778 = vadd.xlane.f32.xlu0 %v777
        %v779 = vpop.xlane.xlu0 %778
        %v780 = vmul.f32 %v776, %v767
        %v781 = vmul.f32 %v779, %v767
        %v782 = vadd.f32 %v780, 1e-05
        %v783 = vadd.f32 %v781, 1e-05
        %v784 = vrsqrt.pop %v782
        %v785 = vmul.f32 %v784, %v782
        %v786 = vmul.f32 %v785, %v784
        %v787 = vmul.f32 0.5, %v786
        %v788 = vsub.f32 1.5, %v787
        %v789 = vmul.f32 %v784, %v788
        %vm790 = vweird.f32 %v782
        %vm791 = vweird.f32 %v784
        %vm792 = vmor %vm790, %vm791
        %v793 = vsel %vm792, %v784, %v789
        %v794 = vrsqrt.pop %v783
        %v795 = vmul.f32 %v794, %v783
        %v796 = vmul.f32 %v795, %v794
        %v797 = vmul.f32 0.5, %v796
        %v798 = vsub.f32 1.5, %v797
        %v799 = vmul.f32 %v794, %v798
        %vm800 = vweird.f32 %v783
        %vm801 = vweird.f32 %v794
        %vm802 = vmor %vm800, %vm801
        %v803 = vsel %vm802, %v794, %v799
        %v804 = vmul.f32 %v770, %v793
        %v805 = vmul.f32 %v771, %v803
        %v806 = vsel %vm754, %v750, 0.0
        %807 = vadd.xlane.f32.xlu0 %v806
        %v808 = vpop.xlane.xlu0 %807
        %v809 = vsel %vm754, %v751, 0.0
        %810 = vadd.xlane.f32.xlu0 %v809
        %v811 = vpop.xlane.xlu0 %810
        %v812 = vmul.f32 %v808, %v767
        %v813 = vmul.f32 %v811, %v767
        %v814 = vsub.f32 %v750, %v812
        %v815 = vsub.f32 %v751, %v813
        %v816 = vmul.f32 %v814, %v814
        %v817 = vmul.f32 %v815, %v815
        %v818 = vsel %vm754, %v816, 0.0
        %819 = vadd.xlane.f32.xlu0 %v818
        %v820 = vpop.xlane.xlu0 %819
        %v821 = vsel %vm754, %v817, 0.0
        %822 = vadd.xlane.f32.xlu0 %v821
        %v823 = vpop.xlane.xlu0 %822
        %v824 = vmul.f32 %v820, %v767
        %v825 = vmul.f32 %v823, %v767
        %v826 = vadd.f32 %v824, 1e-05
        %v827 = vadd.f32 %v825, 1e-05
        %v828 = vrsqrt.pop %v826
        %v829 = vmul.f32 %v828, %v826
        %v830 = vmul.f32 %v829, %v828
        %v831 = vmul.f32 0.5, %v830
        %v832 = vsub.f32 1.5, %v831
        %v833 = vmul.f32 %v828, %v832
        %vm834 = vweird.f32 %v826
        %vm835 = vweird.f32 %v828
        %vm836 = vmor %vm834, %vm835
        %v837 = vsel %vm836, %v828, %v833
        %v838 = vrsqrt.pop %v827
        %v839 = vmul.f32 %v838, %v827
        %v840 = vmul.f32 %v839, %v838
        %v841 = vmul.f32 0.5, %v840
        %v842 = vsub.f32 1.5, %v841
        %v843 = vmul.f32 %v838, %v842
        %vm844 = vweird.f32 %v827
        %vm845 = vweird.f32 %v838
        %vm846 = vmor %vm844, %vm845
        %v847 = vsel %vm846, %v838, %v843
        %v848 = vmul.f32 %v814, %v837
        %v849 = vmul.f32 %v815, %v847
        %v850 = vld [vmem:[#allocation5] sm:$0x1]
        %v851 = vperm.slane %v850, 0
        %v852 = vmul.f32 %v804, %v851
        %v853 = vmul.f32 %v805, %v851
        %v854 = vld [vmem:[#allocation5 + $0x1] sm:$0x1]
        %v855 = vperm.slane %v854, 0
        %v856 = vadd.f32 %v852, %v855
        %v857 = vadd.f32 %v853, %v855
        %v858 = vld [vmem:[#allocation5 + $0x2] sm:$0x1]
        %v859 = vperm.slane %v858, 0
        %v860 = vmul.f32 %v804, %v859
        %v861 = vmul.f32 %v805, %v859
        %v862 = vld [vmem:[#allocation5 + $0x3] sm:$0x1]
        %v863 = vperm.slane %v862, 0
        %v864 = vadd.f32 %v860, %v863
        %v865 = vadd.f32 %v861, %v863
        %v866 = vld [vmem:[#allocation5 + $0x4] sm:$0x1]
        %v867 = vperm.slane %v866, 0
        %v868 = vmul.f32 %v848, %v867
        %v869 = vmul.f32 %v849, %v867
        %v870 = vld [vmem:[#allocation5 + $0x5] sm:$0x1]
        %v871 = vperm.slane %v870, 0
        %v872 = vadd.f32 %v868, %v871
        %v873 = vadd.f32 %v869, %v871
        %v874 = vpack.c.bf16 %v857, %v856
        %v875 = vld [vmem:[#allocation7] sm:$0xf]
        %v876 = vld [vmem:[#allocation7 + $0x4] sm:$0xf]
        %v877 = vld [vmem:[#allocation7 + $0x8] sm:$0xf]
        %v878 = vld [vmem:[#allocation7 + $0xc] sm:$0xf]
        %v879 = vld [vmem:[#allocation7 + $0x10] sm:$0xf]
        %v880 = vld [vmem:[#allocation7 + $0x14] sm:$0xf]
        %v881 = vld [vmem:[#allocation7 + $0x18] sm:$0xf]
        %v882 = vld [vmem:[#allocation7 + $0x1c] sm:$0xf]
        %v891 = vunpack.c.l.b16 %v875
        %v892 = vunpack.c.l.b16 %v876
        %v893 = vunpack.c.l.b16 %v877
        %v894 = vunpack.c.l.b16 %v878
        %v895 = vunpack.c.l.b16 %v879
        %v896 = vunpack.c.l.b16 %v880
        %v897 = vunpack.c.l.b16 %v881
        %v898 = vunpack.c.l.b16 %v882
        %v899 = vpack.c.b16 %v892, %v891
        %v900 = vpack.c.b16 %v894, %v893
        %v901 = vpack.c.b16 %v896, %v895
        %v902 = vpack.c.b16 %v898, %v897
        %v908 = vsel %vm754, %v874, 0
        %910 = vmatpush.bf16.msra.mxu0 0
        %911 = vmatpush.bf16.msra.mxu0 0
        %912 = vmatpush.bf16.msra.mxu0 0
        %913 = vmatpush.bf16.msra.mxu0 0
        %914 = vmatpush.bf16.msra.mxu0 %v902
        %915 = vmatpush.bf16.msra.mxu0 %v901
        %916 = vmatpush.bf16.msra.mxu0 %v900
        %917 = vmatpush.bf16.msra.mxu0 %v899
        %918 = vmatmul.bf16.gmra.mxu0 %v908
        %v919 = vpop.f32.mrf.mxu0
        %v920 = vadd.f32 0.0, %v919
        %v921 = vpop.f32.mrf.mxu0
        %v922 = vadd.f32 0.0, %v921
        %923 = vdwg.mxu0
        %v924 = vmul.f32 %v920, 0.17677669
        %v925 = vmul.f32 %v922, 0.17677669
        %v926 = vpack.c.bf16 %v865, %v864
        %v927 = vld [vmem:[#allocation8] sm:$0xf]
        %v928 = vld [vmem:[#allocation8 + $0x4] sm:$0xf]
        %v929 = vld [vmem:[#allocation8 + $0x8] sm:$0xf]
        %v930 = vld [vmem:[#allocation8 + $0xc] sm:$0xf]
        %v931 = vld [vmem:[#allocation8 + $0x10] sm:$0xf]
        %v932 = vld [vmem:[#allocation8 + $0x14] sm:$0xf]
        %v933 = vld [vmem:[#allocation8 + $0x18] sm:$0xf]
        %v934 = vld [vmem:[#allocation8 + $0x1c] sm:$0xf]
        %v943 = vunpack.c.l.b16 %v927
        %v944 = vunpack.c.l.b16 %v928
        %v945 = vunpack.c.l.b16 %v929
        %v946 = vunpack.c.l.b16 %v930
        %v947 = vunpack.c.l.b16 %v931
        %v948 = vunpack.c.l.b16 %v932
        %v949 = vunpack.c.l.b16 %v933
        %v950 = vunpack.c.l.b16 %v934
        %v951 = vpack.c.b16 %v944, %v943
        %v952 = vpack.c.b16 %v946, %v945
        %v953 = vpack.c.b16 %v948, %v947
        %v954 = vpack.c.b16 %v950, %v949
        %v960 = vsel %vm754, %v926, 0
        %962 = vmatpush.bf16.msra.mxu0 0
        %963 = vmatpush.bf16.msra.mxu0 0
        %964 = vmatpush.bf16.msra.mxu0 0
        %965 = vmatpush.bf16.msra.mxu0 0
        %966 = vmatpush.bf16.msra.mxu0 %v954
        %967 = vmatpush.bf16.msra.mxu0 %v953
        %968 = vmatpush.bf16.msra.mxu0 %v952
        %969 = vmatpush.bf16.msra.mxu0 %v951
        %970 = vmatmul.bf16.gmra.mxu0 %v960
        %v971 = vpop.f32.mrf.mxu0
        %v972 = vadd.f32 0.0, %v971
        %v973 = vpop.f32.mrf.mxu0
        %v974 = vadd.f32 0.0, %v973
        %975 = vdwg.mxu0
        %v976 = vpack.c.bf16 %v873, %v872
        %v977 = vld [vmem:[#allocation10] sm:$0xf]
        %v978 = vld [vmem:[#allocation10 + $0x4] sm:$0xf]
        %v979 = vld [vmem:[#allocation10 + $0x8] sm:$0xf]
        %v980 = vld [vmem:[#allocation10 + $0xc] sm:$0xf]
        %v981 = vld [vmem:[#allocation10 + $0x10] sm:$0xf]
        %v982 = vld [vmem:[#allocation10 + $0x14] sm:$0xf]
        %v983 = vld [vmem:[#allocation10 + $0x18] sm:$0xf]
        %v984 = vld [vmem:[#allocation10 + $0x1c] sm:$0xf]
        %v993 = vunpack.c.l.b16 %v977
        %v994 = vunpack.c.l.b16 %v978
        %v995 = vunpack.c.l.b16 %v979
        %v996 = vunpack.c.l.b16 %v980
        %v997 = vunpack.c.l.b16 %v981
        %v998 = vunpack.c.l.b16 %v982
        %v999 = vunpack.c.l.b16 %v983
        %v1000 = vunpack.c.l.b16 %v984
        %v1001 = vpack.c.b16 %v994, %v993
        %v1002 = vpack.c.b16 %v996, %v995
        %v1003 = vpack.c.b16 %v998, %v997
        %v1004 = vpack.c.b16 %v1000, %v999
        %v1010 = vsel %vm754, %v976, 0
        %1012 = vmatpush.bf16.msra.mxu0 0
        %1013 = vmatpush.bf16.msra.mxu0 0
        %1014 = vmatpush.bf16.msra.mxu0 0
        %1015 = vmatpush.bf16.msra.mxu0 0
        %1016 = vmatpush.bf16.msra.mxu0 %v1004
        %1017 = vmatpush.bf16.msra.mxu0 %v1003
        %1018 = vmatpush.bf16.msra.mxu0 %v1002
        %1019 = vmatpush.bf16.msra.mxu0 %v1001
        %1020 = vmatmul.bf16.gmra.mxu0 %v1010
        %v1021 = vpop.f32.mrf.mxu0
        %v1022 = vadd.f32 0.0, %v1021
        %v1023 = vpop.f32.mrf.mxu0
        %v1024 = vadd.f32 0.0, %v1023
        %1025 = vdwg.mxu0
        %v1026 = vlaneseq
        %v1027 = vshrl.u32 %v1026, 7
        %v1028 = vadd.s32 %v1027, 8
        %v1029 = vlaneseq
        %v1030 = vand.u32 %v1029, 127
        %vm1031 = vcmp.eq.s32.totalorder %v1027, %v1030
        %vm1032 = vcmp.eq.s32.totalorder %v1028, %v1030
        %v1033 = vpack.c.bf16 %v925, %v924
        %v1034 = vpack.c.bf16 %v974, %v972
        %v1035 = vpack.c.bf16 %v1024, %v1022
        %vm1036 = vcmask 261120
        %v1038 = vsel %vm1036, %v1033, 0
        %v1041 = vsel %vm1036, %v1034, 0
        %1043 = vmatpush.bf16.xpose.msra.mxu0 0
        %1044 = vmatpush.bf16.xpose.msra.mxu0 0
        %1045 = vmatpush.bf16.xpose.msra.mxu0 0
        %1046 = vmatpush.bf16.xpose.msra.mxu0 0
        %1047 = vmatpush.bf16.xpose.msra.mxu0 0
        %1048 = vmatpush.bf16.xpose.msra.mxu0 0
        %1049 = vmatpush.bf16.xpose.msra.mxu0 0
        %1050 = vmatpush.bf16.xpose.msra.mxu0 %v1041
        %1051 = vmatmul.bf16.gmra.mxu0 %v1038
        %v1052 = vpop.f32.mrf.mxu0
        %v1053 = vadd.f32 0.0, %v1052
        %v1054 = vpop.f32.mrf.mxu0
        %v1055 = vadd.f32 0.0, %v1054
        %1056 = vdwg.mxu0
        %v1057 = vsel %vm1031, -1e+32, %v1053
        %v1058 = vsel %vm1032, -1e+32, %v1055
        %vm1059 = vcmask 130048
        %v1060 = vsel %vm1059, %v1057, -inf
        %1061 = vmax.xlane.f32.xlu0 %v1060
        %v1062 = vpop.xlane.xlu0 %1061
        %v1063 = vsel %vm1059, %v1058, -inf
        %1064 = vmax.xlane.f32.xlu0 %v1063
        %v1065 = vpop.xlane.xlu0 %1064
        %v1066 = vsub.f32 %v1057, %v1062
        %v1067 = vsub.f32 %v1058, %v1065
        %v1068 = vmul.f32 %v1066, 1.442695
        %v1069 = vpow.pop %v1068
        %v1070 = vmul.f32 %v1067, 1.442695
        %v1071 = vpow.pop %v1070
        %v1072 = vsel %vm1059, %v1069, 0.0
        %1073 = vadd.xlane.f32.xlu0 %v1072
        %v1074 = vpop.xlane.xlu0 %1073
        %v1075 = vsel %vm1059, %v1071, 0.0
        %1076 = vadd.xlane.f32.xlu0 %v1075
        %v1077 = vpop.xlane.xlu0 %1076
        %v1078 = vrcp.pop %v1074
        %v1079 = vrcp.pop %v1077
        %v1080 = vmul.f32 %v1069, %v1078
        %v1081 = vmul.f32 %v1071, %v1079
        %1082 = vst.msk [vmem:[%s736] sm:$0xff] %vm1059, %v1080
        %1083 = vst.msk [vmem:[%s736 + $0x8] sm:$0xff] %vm1059, %v1081
        %v1084 = vpack.c.bf16 %v1081, %v1080
        %v1086 = vsel %vm1059, %v1084, 0
        %1088 = vmatpush.bf16.msra.mxu0 0
        %1089 = vmatpush.bf16.msra.mxu0 0
        %1090 = vmatpush.bf16.msra.mxu0 0
        %1091 = vmatpush.bf16.msra.mxu0 0
        %1092 = vmatpush.bf16.msra.mxu0 0
        %1093 = vmatpush.bf16.msra.mxu0 0
        %1094 = vmatpush.bf16.msra.mxu0 0
        %1095 = vmatpush.bf16.msra.mxu0 %v1035
        %1096 = vmatmul.bf16.gmra.mxu0 %v1086
        %v1097 = vpop.f32.mrf.mxu0
        %v1098 = vadd.f32 0.0, %v1097
        %v1099 = vpop.f32.mrf.mxu0
        %v1100 = vadd.f32 0.0, %v1099
        %1101 = vdwg.mxu0
        %1103 = vrot.lane.b32.xlu0 %v1033, 96
        %v1104 = vpop.permute.xlu0 %1103
        %1106 = vrot.lane.b32.xlu0 %v1034, 96
        %v1107 = vpop.permute.xlu0 %1106
        %v1109 = vsel %vm1036, %v1104, 0
        %v1112 = vsel %vm1036, %v1107, 0
        %1114 = vmatpush.bf16.xpose.msra.mxu0 0
        %1115 = vmatpush.bf16.xpose.msra.mxu0 0
        %1116 = vmatpush.bf16.xpose.msra.mxu0 0
        %1117 = vmatpush.bf16.xpose.msra.mxu0 0
        %1118 = vmatpush.bf16.xpose.msra.mxu0 0
        %1119 = vmatpush.bf16.xpose.msra.mxu0 0
        %1120 = vmatpush.bf16.xpose.msra.mxu0 0
        %1121 = vmatpush.bf16.xpose.msra.mxu0 %v1112
        %1122 = vmatmul.bf16.gmra.mxu0 %v1109
        %v1123 = vpop.f32.mrf.mxu0
        %v1124 = vadd.f32 0.0, %v1123
        %v1125 = vpop.f32.mrf.mxu0
        %v1126 = vadd.f32 0.0, %v1125
        %1127 = vdwg.mxu0
        %v1128 = vsel %vm1031, -1e+32, %v1124
        %v1129 = vsel %vm1032, -1e+32, %v1126
        %v1130 = vsel %vm1059, %v1128, -inf
        %1131 = vmax.xlane.f32.xlu0 %v1130
        %v1132 = vpop.xlane.xlu0 %1131
        %v1133 = vsel %vm1059, %v1129, -inf
        %1134 = vmax.xlane.f32.xlu0 %v1133
        %v1135 = vpop.xlane.xlu0 %1134
        %v1136 = vsub.f32 %v1128, %v1132
        %v1137 = vsub.f32 %v1129, %v1135
        %v1138 = vmul.f32 %v1136, 1.442695
        %v1139 = vpow.pop %v1138
        %v1140 = vmul.f32 %v1137, 1.442695
        %v1141 = vpow.pop %v1140
        %v1142 = vsel %vm1059, %v1139, 0.0
        %1143 = vadd.xlane.f32.xlu0 %v1142
        %v1144 = vpop.xlane.xlu0 %1143
        %v1145 = vsel %vm1059, %v1141, 0.0
        %1146 = vadd.xlane.f32.xlu0 %v1145
        %v1147 = vpop.xlane.xlu0 %1146
        %v1148 = vrcp.pop %v1144
        %v1149 = vrcp.pop %v1147
        %v1150 = vmul.f32 %v1139, %v1148
        %v1151 = vmul.f32 %v1141, %v1149
        %s1152 = scalar_lea.vmem %s736, 16 [#allocation22]
        %1153 = vst.msk [vmem:[%s1152] sm:$0xff] %vm1059, %v1150
        %1154 = vst.msk [vmem:[%s1152 + $0x8] sm:$0xff] %vm1059, %v1151
        %v1155 = vpack.c.bf16 %v1151, %v1150
        %1157 = vrot.lane.b32.xlu0 %v1035, 96
        %v1158 = vpop.permute.xlu0 %1157
        %v1161 = vsel %vm1059, %v1155, 0
        %1163 = vmatpush.bf16.msra.mxu0 0
        %1164 = vmatpush.bf16.msra.mxu0 0
        %1165 = vmatpush.bf16.msra.mxu0 0
        %1166 = vmatpush.bf16.msra.mxu0 0
        %1167 = vmatpush.bf16.msra.mxu0 0
        %1168 = vmatpush.bf16.msra.mxu0 0
        %1169 = vmatpush.bf16.msra.mxu0 0
        %1170 = vmatpush.bf16.msra.mxu0 %v1158
        %1171 = vmatmul.bf16.gmra.mxu0 %v1161
        %v1172 = vpop.f32.mrf.mxu0
        %v1173 = vadd.f32 0.0, %v1172
        %v1174 = vpop.f32.mrf.mxu0
        %v1175 = vadd.f32 0.0, %v1174
        %1176 = vdwg.mxu0
        %1177 = vrot.lane.b32.xlu0 %v1033, 64
        %v1178 = vpop.permute.xlu0 %1177
        %1179 = vrot.lane.b32.xlu0 %v1034, 64
        %v1180 = vpop.permute.xlu0 %1179
        %v1182 = vsel %vm1036, %v1178, 0
        %v1185 = vsel %vm1036, %v1180, 0
        %1187 = vmatpush.bf16.xpose.msra.mxu0 0
        %1188 = vmatpush.bf16.xpose.msra.mxu0 0
        %1189 = vmatpush.bf16.xpose.msra.mxu0 0
        %1190 = vmatpush.bf16.xpose.msra.mxu0 0
        %1191 = vmatpush.bf16.xpose.msra.mxu0 0
        %1192 = vmatpush.bf16.xpose.msra.mxu0 0
        %1193 = vmatpush.bf16.xpose.msra.mxu0 0
        %1194 = vmatpush.bf16.xpose.msra.mxu0 %v1185
        %1195 = vmatmul.bf16.gmra.mxu0 %v1182
        %v1196 = vpop.f32.mrf.mxu0
        %v1197 = vadd.f32 0.0, %v1196
        %v1198 = vpop.f32.mrf.mxu0
        %v1199 = vadd.f32 0.0, %v1198
        %1200 = vdwg.mxu0
        %v1201 = vsel %vm1031, -1e+32, %v1197
        %v1202 = vsel %vm1032, -1e+32, %v1199
        %v1203 = vsel %vm1059, %v1201, -inf
        %1204 = vmax.xlane.f32.xlu0 %v1203
        %v1205 = vpop.xlane.xlu0 %1204
        %v1206 = vsel %vm1059, %v1202, -inf
        %1207 = vmax.xlane.f32.xlu0 %v1206
        %v1208 = vpop.xlane.xlu0 %1207
        %v1209 = vsub.f32 %v1201, %v1205
        %v1210 = vsub.f32 %v1202, %v1208
        %v1211 = vmul.f32 %v1209, 1.442695
        %v1212 = vpow.pop %v1211
        %v1213 = vmul.f32 %v1210, 1.442695
        %v1214 = vpow.pop %v1213
        %v1215 = vsel %vm1059, %v1212, 0.0
        %1216 = vadd.xlane.f32.xlu0 %v1215
        %v1217 = vpop.xlane.xlu0 %1216
        %v1218 = vsel %vm1059, %v1214, 0.0
        %1219 = vadd.xlane.f32.xlu0 %v1218
        %v1220 = vpop.xlane.xlu0 %1219
        %v1221 = vrcp.pop %v1217
        %v1222 = vrcp.pop %v1220
        %v1223 = vmul.f32 %v1212, %v1221
        %v1224 = vmul.f32 %v1214, %v1222
        %s1225 = scalar_lea.vmem %s736, 32 [#allocation22]
        %1226 = vst.msk [vmem:[%s1225] sm:$0xff] %vm1059, %v1223
        %1227 = vst.msk [vmem:[%s1225 + $0x8] sm:$0xff] %vm1059, %v1224
        %v1228 = vpack.c.bf16 %v1224, %v1223
        %1229 = vrot.lane.b32.xlu0 %v1035, 64
        %v1230 = vpop.permute.xlu0 %1229
        %v1233 = vsel %vm1059, %v1228, 0
        %1235 = vmatpush.bf16.msra.mxu0 0
        %1236 = vmatpush.bf16.msra.mxu0 0
        %1237 = vmatpush.bf16.msra.mxu0 0
        %1238 = vmatpush.bf16.msra.mxu0 0
        %1239 = vmatpush.bf16.msra.mxu0 0
        %1240 = vmatpush.bf16.msra.mxu0 0
        %1241 = vmatpush.bf16.msra.mxu0 0
        %1242 = vmatpush.bf16.msra.mxu0 %v1230
        %1243 = vmatmul.bf16.gmra.mxu0 %v1233
        %v1244 = vpop.f32.mrf.mxu0
        %v1245 = vadd.f32 0.0, %v1244
        %v1246 = vpop.f32.mrf.mxu0
        %v1247 = vadd.f32 0.0, %v1246
        %1248 = vdwg.mxu0
        %1249 = vrot.lane.b32.xlu0 %v1033, 32
        %v1250 = vpop.permute.xlu0 %1249
        %1251 = vrot.lane.b32.xlu0 %v1034, 32
        %v1252 = vpop.permute.xlu0 %1251
        %v1254 = vsel %vm1036, %v1250, 0
        %v1257 = vsel %vm1036, %v1252, 0
        %1259 = vmatpush.bf16.xpose.msra.mxu0 0
        %1260 = vmatpush.bf16.xpose.msra.mxu0 0
        %1261 = vmatpush.bf16.xpose.msra.mxu0 0
        %1262 = vmatpush.bf16.xpose.msra.mxu0 0
        %1263 = vmatpush.bf16.xpose.msra.mxu0 0
        %1264 = vmatpush.bf16.xpose.msra.mxu0 0
        %1265 = vmatpush.bf16.xpose.msra.mxu0 0
        %1266 = vmatpush.bf16.xpose.msra.mxu0 %v1257
        %1267 = vmatmul.bf16.gmra.mxu0 %v1254
        %v1268 = vpop.f32.mrf.mxu0
        %v1269 = vadd.f32 0.0, %v1268
        %v1270 = vpop.f32.mrf.mxu0
        %v1271 = vadd.f32 0.0, %v1270
        %1272 = vdwg.mxu0
        %v1273 = vsel %vm1031, -1e+32, %v1269
        %v1274 = vsel %vm1032, -1e+32, %v1271
        %v1275 = vsel %vm1059, %v1273, -inf
        %1276 = vmax.xlane.f32.xlu0 %v1275
        %v1277 = vpop.xlane.xlu0 %1276
        %v1278 = vsel %vm1059, %v1274, -inf
        %1279 = vmax.xlane.f32.xlu0 %v1278
        %v1280 = vpop.xlane.xlu0 %1279
        %v1281 = vsub.f32 %v1273, %v1277
        %v1282 = vsub.f32 %v1274, %v1280
        %v1283 = vmul.f32 %v1281, 1.442695
        %v1284 = vpow.pop %v1283
        %v1285 = vmul.f32 %v1282, 1.442695
        %v1286 = vpow.pop %v1285
        %v1287 = vsel %vm1059, %v1284, 0.0
        %1288 = vadd.xlane.f32.xlu0 %v1287
        %v1289 = vpop.xlane.xlu0 %1288
        %v1290 = vsel %vm1059, %v1286, 0.0
        %1291 = vadd.xlane.f32.xlu0 %v1290
        %v1292 = vpop.xlane.xlu0 %1291
        %v1293 = vrcp.pop %v1289
        %v1294 = vrcp.pop %v1292
        %v1295 = vmul.f32 %v1284, %v1293
        %v1296 = vmul.f32 %v1286, %v1294
        %s1297 = scalar_lea.vmem %s736, 48 [#allocation22]
        %1298 = vst.msk [vmem:[%s1297] sm:$0xff] %vm1059, %v1295
        %1299 = vst.msk [vmem:[%s1297 + $0x8] sm:$0xff] %vm1059, %v1296
        %v1300 = vpack.c.bf16 %v1296, %v1295
        %1301 = vrot.lane.b32.xlu0 %v1035, 32
        %v1302 = vpop.permute.xlu0 %1301
        %v1305 = vsel %vm1059, %v1300, 0
        %1307 = vmatpush.bf16.msra.mxu0 0
        %1308 = vmatpush.bf16.msra.mxu0 0
        %1309 = vmatpush.bf16.msra.mxu0 0
        %1310 = vmatpush.bf16.msra.mxu0 0
        %1311 = vmatpush.bf16.msra.mxu0 0
        %1312 = vmatpush.bf16.msra.mxu0 0
        %1313 = vmatpush.bf16.msra.mxu0 0
        %1314 = vmatpush.bf16.msra.mxu0 %v1302
        %1315 = vmatmul.bf16.gmra.mxu0 %v1305
        %v1316 = vpop.f32.mrf.mxu0
        %v1317 = vadd.f32 0.0, %v1316
        %v1318 = vpop.f32.mrf.mxu0
        %v1319 = vadd.f32 0.0, %v1318
        %1320 = vdwg.mxu0
        %1323 = vrot.lane.b32.xlu0 %v1173, 32
        %v1324 = vpop.permute.xlu0 %1323
        %1325 = vrot.lane.b32.xlu0 %v1175, 32
        %v1326 = vpop.permute.xlu0 %1325
        %1331 = vrot.lane.b32.xlu0 %v1245, 64
        %v1332 = vpop.permute.xlu0 %1331
        %1333 = vrot.lane.b32.xlu0 %v1247, 64
        %v1334 = vpop.permute.xlu0 %1333
        %1339 = vrot.lane.b32.xlu0 %v1317, 96
        %v1340 = vpop.permute.xlu0 %1339
        %1341 = vrot.lane.b32.xlu0 %v1319, 96
        %v1342 = vpop.permute.xlu0 %1341
        %v1345 = vsel %vm1036, %v1098, %v1324
        %v1346 = vsel %vm1036, %v1100, %v1326
        %v1347 = vsel %vm754, %v1345, %v1332
        %v1348 = vsel %vm754, %v1346, %v1334
        %vm1349 = vcmask 785408
        %v1350 = vsel %vm1349, %v1347, %v1340
        %v1351 = vsel %vm1349, %v1348, %v1342
        %1353 = vset.pattern.permute.xlu0 0
        %1354 = vperm.xlu0 %1353, %v752
        %v1355 = vpop.permute.xlu0 %1354
        %1358 = vset.pattern.permute.xlu0 0
        %1359 = vperm.xlu0 %1358, %v753
        %v1360 = vpop.permute.xlu0 %1359
        %v1362 = vpack.c.bf16 %v1351, %v1350
        %v1363 = vld [vmem:[#allocation11] sm:$0xf]
        %v1364 = vld [vmem:[#allocation11 + $0x4] sm:$0xf]
        %v1365 = vld [vmem:[#allocation11 + $0x8] sm:$0xf]
        %v1366 = vld [vmem:[#allocation11 + $0xc] sm:$0xf]
        %v1367 = vld [vmem:[#allocation11 + $0x10] sm:$0xf]
        %v1368 = vld [vmem:[#allocation11 + $0x14] sm:$0xf]
        %v1369 = vld [vmem:[#allocation11 + $0x18] sm:$0xf]
        %v1370 = vld [vmem:[#allocation11 + $0x1c] sm:$0xf]
        %v1371 = vld [vmem:[#allocation11 + $0x20] sm:$0xf]
        %v1372 = vld [vmem:[#allocation11 + $0x24] sm:$0xf]
        %v1373 = vld [vmem:[#allocation11 + $0x28] sm:$0xf]
        %v1374 = vld [vmem:[#allocation11 + $0x2c] sm:$0xf]
        %v1375 = vld [vmem:[#allocation11 + $0x30] sm:$0xf]
        %v1376 = vld [vmem:[#allocation11 + $0x34] sm:$0xf]
        %v1377 = vld [vmem:[#allocation11 + $0x38] sm:$0xf]
        %v1378 = vld [vmem:[#allocation11 + $0x3c] sm:$0xf]
        %v1395 = vunpack.c.l.b16 %v1363
        %v1396 = vunpack.c.l.b16 %v1364
        %v1397 = vunpack.c.l.b16 %v1365
        %v1398 = vunpack.c.l.b16 %v1366
        %v1399 = vunpack.c.l.b16 %v1367
        %v1400 = vunpack.c.l.b16 %v1368
        %v1401 = vunpack.c.l.b16 %v1369
        %v1402 = vunpack.c.l.b16 %v1370
        %v1403 = vunpack.c.l.b16 %v1371
        %v1404 = vunpack.c.l.b16 %v1372
        %v1405 = vunpack.c.l.b16 %v1373
        %v1406 = vunpack.c.l.b16 %v1374
        %v1407 = vunpack.c.l.b16 %v1375
        %v1408 = vunpack.c.l.b16 %v1376
        %v1409 = vunpack.c.l.b16 %v1377
        %v1410 = vunpack.c.l.b16 %v1378
        %v1411 = vpack.c.b16 %v1396, %v1395
        %v1412 = vpack.c.b16 %v1398, %v1397
        %v1413 = vpack.c.b16 %v1400, %v1399
        %v1414 = vpack.c.b16 %v1402, %v1401
        %v1415 = vpack.c.b16 %v1404, %v1403
        %v1416 = vpack.c.b16 %v1406, %v1405
        %v1417 = vpack.c.b16 %v1408, %v1407
        %v1418 = vpack.c.b16 %v1410, %v1409
        %1427 = vmatpush.bf16.msra.mxu0 %v1418
        %1428 = vmatpush.bf16.msra.mxu0 %v1417
        %1429 = vmatpush.bf16.msra.mxu0 %v1416
        %1430 = vmatpush.bf16.msra.mxu0 %v1415
        %1431 = vmatpush.bf16.msra.mxu0 %v1414
        %1432 = vmatpush.bf16.msra.mxu0 %v1413
        %1433 = vmatpush.bf16.msra.mxu0 %v1412
        %1434 = vmatpush.bf16.msra.mxu0 %v1411
        %1435 = vmatmul.bf16.gmra.mxu0 %v1362
        %v1436 = vpop.f32.mrf.mxu0
        %v1437 = vadd.f32 0.0, %v1436
        %v1438 = vpop.f32.mrf.mxu0
        %v1439 = vadd.f32 0.0, %v1438
        %1440 = vdwg.mxu0
        %v1441 = vmul.f32 %v1437, %v1355
        %v1442 = vmul.f32 %v1439, %v1360
        %v1443 = vpack.c.bf16 %v1442, %v1441
        %v1444 = vld [vmem:[#allocation13] sm:$0xf]
        %v1445 = vld [vmem:[#allocation13 + $0x4] sm:$0xf]
        %v1446 = vld [vmem:[#allocation13 + $0x8] sm:$0xf]
        %v1447 = vld [vmem:[#allocation13 + $0xc] sm:$0xf]
        %v1448 = vld [vmem:[#allocation13 + $0x10] sm:$0xf]
        %v1449 = vld [vmem:[#allocation13 + $0x14] sm:$0xf]
        %v1450 = vld [vmem:[#allocation13 + $0x18] sm:$0xf]
        %v1451 = vld [vmem:[#allocation13 + $0x1c] sm:$0xf]
        %v1452 = vld [vmem:[#allocation13 + $0x20] sm:$0xf]
        %v1453 = vld [vmem:[#allocation13 + $0x24] sm:$0xf]
        %v1454 = vld [vmem:[#allocation13 + $0x28] sm:$0xf]
        %v1455 = vld [vmem:[#allocation13 + $0x2c] sm:$0xf]
        %v1456 = vld [vmem:[#allocation13 + $0x30] sm:$0xf]
        %v1457 = vld [vmem:[#allocation13 + $0x34] sm:$0xf]
        %v1458 = vld [vmem:[#allocation13 + $0x38] sm:$0xf]
        %v1459 = vld [vmem:[#allocation13 + $0x3c] sm:$0xf]
        %v1460 = vld [vmem:[%s10] sm:$0x1]
        %v1461 = vperm.slane %v1460, 0
        %v1478 = vunpack.c.l.b16 %v1444
        %v1479 = vunpack.c.l.b16 %v1445
        %v1480 = vunpack.c.l.b16 %v1446
        %v1481 = vunpack.c.l.b16 %v1447
        %v1482 = vunpack.c.l.b16 %v1448
        %v1483 = vunpack.c.l.b16 %v1449
        %v1484 = vunpack.c.l.b16 %v1450
        %v1485 = vunpack.c.l.b16 %v1451
        %v1486 = vunpack.c.l.b16 %v1452
        %v1487 = vunpack.c.l.b16 %v1453
        %v1488 = vunpack.c.l.b16 %v1454
        %v1489 = vunpack.c.l.b16 %v1455
        %v1490 = vunpack.c.l.b16 %v1456
        %v1491 = vunpack.c.l.b16 %v1457
        %v1492 = vunpack.c.l.b16 %v1458
        %v1493 = vunpack.c.l.b16 %v1459
        %v1494 = vpack.c.b16 %v1479, %v1478
        %v1495 = vpack.c.b16 %v1481, %v1480
        %v1496 = vpack.c.b16 %v1483, %v1482
        %v1497 = vpack.c.b16 %v1485, %v1484
        %v1498 = vpack.c.b16 %v1487, %v1486
        %v1499 = vpack.c.b16 %v1489, %v1488
        %v1500 = vpack.c.b16 %v1491, %v1490
        %v1501 = vpack.c.b16 %v1493, %v1492
        %1510 = vmatpush.bf16.msra.mxu0 %v1501
        %1511 = vmatpush.bf16.msra.mxu0 %v1500
        %1512 = vmatpush.bf16.msra.mxu0 %v1499
        %1513 = vmatpush.bf16.msra.mxu0 %v1498
        %1514 = vmatpush.bf16.msra.mxu0 %v1497
        %1515 = vmatpush.bf16.msra.mxu0 %v1496
        %1516 = vmatpush.bf16.msra.mxu0 %v1495
        %1517 = vmatpush.bf16.msra.mxu0 %v1494
        %1518 = vmatmul.bf16.gmra.mxu0 %v1443
        %v1519 = vpop.f32.mrf.mxu0
        %v1520 = vadd.f32 %v1461, %v1519
        %v1521 = vpop.f32.mrf.mxu0
        %v1522 = vadd.f32 %v1461, %v1521
        %1523 = vdwg.mxu0
        %v1524 = vtanh.pop %v1520
        %v1525 = vtanh.pop %v1522
        %v1526 = vpack.c.bf16 %v1525, %v1524
        %v1527 = vld [vmem:[#allocation14] sm:$0xf]
        %v1528 = vld [vmem:[#allocation14 + $0x4] sm:$0xf]
        %v1529 = vld [vmem:[#allocation14 + $0x8] sm:$0xf]
        %v1530 = vld [vmem:[#allocation14 + $0xc] sm:$0xf]
        %v1531 = vld [vmem:[#allocation14 + $0x10] sm:$0xf]
        %v1532 = vld [vmem:[#allocation14 + $0x14] sm:$0xf]
        %v1533 = vld [vmem:[#allocation14 + $0x18] sm:$0xf]
        %v1534 = vld [vmem:[#allocation14 + $0x1c] sm:$0xf]
        %v1535 = vld [vmem:[#allocation14 + $0x20] sm:$0xf]
        %v1536 = vld [vmem:[#allocation14 + $0x24] sm:$0xf]
        %v1537 = vld [vmem:[#allocation14 + $0x28] sm:$0xf]
        %v1538 = vld [vmem:[#allocation14 + $0x2c] sm:$0xf]
        %v1539 = vld [vmem:[#allocation14 + $0x30] sm:$0xf]
        %v1540 = vld [vmem:[#allocation14 + $0x34] sm:$0xf]
        %v1541 = vld [vmem:[#allocation14 + $0x38] sm:$0xf]
        %v1542 = vld [vmem:[#allocation14 + $0x3c] sm:$0xf]
        %v1543 = vld [vmem:[%s10 + $0x1] sm:$0x1]
        %v1544 = vperm.slane %v1543, 0
        %v1561 = vunpack.c.l.b16 %v1527
        %v1562 = vunpack.c.l.b16 %v1528
        %v1563 = vunpack.c.l.b16 %v1529
        %v1564 = vunpack.c.l.b16 %v1530
        %v1565 = vunpack.c.l.b16 %v1531
        %v1566 = vunpack.c.l.b16 %v1532
        %v1567 = vunpack.c.l.b16 %v1533
        %v1568 = vunpack.c.l.b16 %v1534
        %v1569 = vunpack.c.l.b16 %v1535
        %v1570 = vunpack.c.l.b16 %v1536
        %v1571 = vunpack.c.l.b16 %v1537
        %v1572 = vunpack.c.l.b16 %v1538
        %v1573 = vunpack.c.l.b16 %v1539
        %v1574 = vunpack.c.l.b16 %v1540
        %v1575 = vunpack.c.l.b16 %v1541
        %v1576 = vunpack.c.l.b16 %v1542
        %v1577 = vpack.c.b16 %v1562, %v1561
        %v1578 = vpack.c.b16 %v1564, %v1563
        %v1579 = vpack.c.b16 %v1566, %v1565
        %v1580 = vpack.c.b16 %v1568, %v1567
        %v1581 = vpack.c.b16 %v1570, %v1569
        %v1582 = vpack.c.b16 %v1572, %v1571
        %v1583 = vpack.c.b16 %v1574, %v1573
        %v1584 = vpack.c.b16 %v1576, %v1575
        %1593 = vmatpush.bf16.msra.mxu0 %v1584
        %1594 = vmatpush.bf16.msra.mxu0 %v1583
        %1595 = vmatpush.bf16.msra.mxu0 %v1582
        %1596 = vmatpush.bf16.msra.mxu0 %v1581
        %1597 = vmatpush.bf16.msra.mxu0 %v1580
        %1598 = vmatpush.bf16.msra.mxu0 %v1579
        %1599 = vmatpush.bf16.msra.mxu0 %v1578
        %1600 = vmatpush.bf16.msra.mxu0 %v1577
        %1601 = vmatmul.bf16.gmra.mxu0 %v1526
        %v1602 = vpop.f32.mrf.mxu0
        %v1603 = vadd.f32 %v1544, %v1602
        %v1604 = vpop.f32.mrf.mxu0
        %v1605 = vadd.f32 %v1544, %v1604
        %1606 = vdwg.mxu0
        %v1607 = vadd.f32 %v1603, %v1441
        %v1608 = vadd.f32 %v1605, %v1442
        %1609 = vadd.xlane.f32.xlu0 %v1607
        %v1610 = vpop.xlane.xlu0 %1609
        %1611 = vadd.xlane.f32.xlu0 %v1608
        %v1612 = vpop.xlane.xlu0 %1611
        %v1613 = vrcp.pop 128.0
        %v1614 = vmul.f32 128.0, %v1613
        %v1615 = vsub.f32 1.0, %v1614
        %v1616 = vmul.f32 %v1613, %v1615
        %v1617 = vadd.f32 %v1613, %v1616
        %vm1618 = vweird.f32 %v1613
        %v1619 = vsel %vm1618, %v1613, %v1617
        %v1620 = vmul.f32 %v1610, %v1619
        %v1621 = vmul.f32 %v1612, %v1619
        %v1622 = vsub.f32 %v1607, %v1620
        %v1623 = vsub.f32 %v1608, %v1621
        %v1624 = vmul.f32 %v1622, %v1622
        %v1625 = vmul.f32 %v1623, %v1623
        %1626 = vadd.xlane.f32.xlu0 %v1624
        %v1627 = vpop.xlane.xlu0 %1626
        %1628 = vadd.xlane.f32.xlu0 %v1625
        %v1629 = vpop.xlane.xlu0 %1628
        %v1630 = vmul.f32 %v1627, %v1619
        %v1631 = vmul.f32 %v1629, %v1619
        %v1632 = vadd.f32 %v1630, 1e-05
        %v1633 = vadd.f32 %v1631, 1e-05
        %v1634 = vrsqrt.pop %v1632
        %v1635 = vmul.f32 %v1634, %v1632
        %v1636 = vmul.f32 %v1635, %v1634
        %v1637 = vmul.f32 0.5, %v1636
        %v1638 = vsub.f32 1.5, %v1637
        %v1639 = vmul.f32 %v1634, %v1638
        %vm1640 = vweird.f32 %v1632
        %vm1641 = vweird.f32 %v1634
        %vm1642 = vmor %vm1640, %vm1641
        %v1643 = vsel %vm1642, %v1634, %v1639
        %v1644 = vrsqrt.pop %v1633
        %v1645 = vmul.f32 %v1644, %v1633
        %v1646 = vmul.f32 %v1645, %v1644
        %v1647 = vmul.f32 0.5, %v1646
        %v1648 = vsub.f32 1.5, %v1647
        %v1649 = vmul.f32 %v1644, %v1648
        %vm1650 = vweird.f32 %v1633
        %vm1651 = vweird.f32 %v1644
        %vm1652 = vmor %vm1650, %vm1651
        %v1653 = vsel %vm1652, %v1644, %v1649
        %v1654 = vmul.f32 %v1622, %v1643
        %v1655 = vmul.f32 %v1623, %v1653
        %v1656 = vld [vmem:[%s10 + $0x2] sm:$0x1]
        %v1657 = vperm.slane %v1656, 0
        %v1658 = vmul.f32 %v1654, %v1657
        %v1659 = vmul.f32 %v1655, %v1657
        %v1660 = vld [vmem:[%s10 + $0x3] sm:$0x1]
        %v1661 = vperm.slane %v1660, 0
        %v1662 = vadd.f32 %v1658, %v1661
        %v1663 = vadd.f32 %v1659, %v1661
        %v1664 = vmul.f32 %v1662, %v1355
        %v1665 = vmul.f32 %v1663, %v1360
        %1666 = vst [vmem:[%s722] sm:$0xff] %v1664
        %1667 = vst [vmem:[%s722 + $0x8] sm:$0xff] %v1665
        %v1668 = vmul.f32 %v750, %v1355
        %v1669 = vmul.f32 %v751, %v1360
        %v1670 = vpack.c.bf16 %v1669, %v1668
        %v1671 = vld [vmem:[#allocation16] sm:$0xf]
        %v1672 = vld [vmem:[#allocation16 + $0x4] sm:$0xf]
        %v1673 = vld [vmem:[#allocation16 + $0x8] sm:$0xf]
        %v1674 = vld [vmem:[#allocation16 + $0xc] sm:$0xf]
        %v1675 = vld [vmem:[#allocation16 + $0x10] sm:$0xf]
        %v1676 = vld [vmem:[#allocation16 + $0x14] sm:$0xf]
        %v1677 = vld [vmem:[#allocation16 + $0x18] sm:$0xf]
        %v1678 = vld [vmem:[#allocation16 + $0x1c] sm:$0xf]
        %v1679 = vld [vmem:[%s13] sm:$0x1]
        %v1680 = vperm.slane %v1679, 0
        %v1689 = vunpack.c.l.b16 %v1671
        %v1690 = vunpack.c.l.b16 %v1672
        %v1691 = vunpack.c.l.b16 %v1673
        %v1692 = vunpack.c.l.b16 %v1674
        %v1693 = vunpack.c.l.b16 %v1675
        %v1694 = vunpack.c.l.b16 %v1676
        %v1695 = vunpack.c.l.b16 %v1677
        %v1696 = vunpack.c.l.b16 %v1678
        %v1697 = vpack.c.b16 %v1690, %v1689
        %v1698 = vpack.c.b16 %v1692, %v1691
        %v1699 = vpack.c.b16 %v1694, %v1693
        %v1700 = vpack.c.b16 %v1696, %v1695
        %v1706 = vsel %vm754, %v1670, 0
        %1708 = vmatpush.bf16.msra.mxu0 0
        %1709 = vmatpush.bf16.msra.mxu0 0
        %1710 = vmatpush.bf16.msra.mxu0 0
        %1711 = vmatpush.bf16.msra.mxu0 0
        %1712 = vmatpush.bf16.msra.mxu0 %v1700
        %1713 = vmatpush.bf16.msra.mxu0 %v1699
        %1714 = vmatpush.bf16.msra.mxu0 %v1698
        %1715 = vmatpush.bf16.msra.mxu0 %v1697
        %1716 = vmatmul.bf16.gmra.mxu0 %v1706
        %v1717 = vpop.f32.mrf.mxu0
        %v1718 = vadd.f32 %v1680, %v1717
        %v1719 = vpop.f32.mrf.mxu0
        %v1720 = vadd.f32 %v1680, %v1719
        %1721 = vdwg.mxu0
        %v1722 = vtanh.pop %v1718
        %v1723 = vtanh.pop %v1720
        %v1724 = vpack.c.bf16 %v1723, %v1722
        %v1725 = vld [vmem:[#allocation17] sm:$0xf]
        %v1726 = vld [vmem:[#allocation17 + $0x4] sm:$0xf]
        %v1727 = vld [vmem:[#allocation17 + $0x8] sm:$0xf]
        %v1728 = vld [vmem:[#allocation17 + $0xc] sm:$0xf]
        %v1729 = vld [vmem:[#allocation17 + $0x10] sm:$0xf]
        %v1730 = vld [vmem:[#allocation17 + $0x14] sm:$0xf]
        %v1731 = vld [vmem:[#allocation17 + $0x18] sm:$0xf]
        %v1732 = vld [vmem:[#allocation17 + $0x1c] sm:$0xf]
        %v1733 = vld [vmem:[#allocation17 + $0x20] sm:$0xf]
        %v1734 = vld [vmem:[#allocation17 + $0x24] sm:$0xf]
        %v1735 = vld [vmem:[#allocation17 + $0x28] sm:$0xf]
        %v1736 = vld [vmem:[#allocation17 + $0x2c] sm:$0xf]
        %v1737 = vld [vmem:[#allocation17 + $0x30] sm:$0xf]
        %v1738 = vld [vmem:[#allocation17 + $0x34] sm:$0xf]
        %v1739 = vld [vmem:[#allocation17 + $0x38] sm:$0xf]
        %v1740 = vld [vmem:[#allocation17 + $0x3c] sm:$0xf]
        %v1741 = vld [vmem:[%s13 + $0x1] sm:$0x1]
        %v1742 = vperm.slane %v1741, 0
        %v1759 = vunpack.c.l.b16 %v1725
        %v1760 = vunpack.c.l.b16 %v1726
        %v1761 = vunpack.c.l.b16 %v1727
        %v1762 = vunpack.c.l.b16 %v1728
        %v1763 = vunpack.c.l.b16 %v1729
        %v1764 = vunpack.c.l.b16 %v1730
        %v1765 = vunpack.c.l.b16 %v1731
        %v1766 = vunpack.c.l.b16 %v1732
        %v1767 = vunpack.c.l.b16 %v1733
        %v1768 = vunpack.c.l.b16 %v1734
        %v1769 = vunpack.c.l.b16 %v1735
        %v1770 = vunpack.c.l.b16 %v1736
        %v1771 = vunpack.c.l.b16 %v1737
        %v1772 = vunpack.c.l.b16 %v1738
        %v1773 = vunpack.c.l.b16 %v1739
        %v1774 = vunpack.c.l.b16 %v1740
        %v1775 = vpack.c.b16 %v1760, %v1759
        %v1776 = vpack.c.b16 %v1762, %v1761
        %v1777 = vpack.c.b16 %v1764, %v1763
        %v1778 = vpack.c.b16 %v1766, %v1765
        %v1779 = vpack.c.b16 %v1768, %v1767
        %v1780 = vpack.c.b16 %v1770, %v1769
        %v1781 = vpack.c.b16 %v1772, %v1771
        %v1782 = vpack.c.b16 %v1774, %v1773
        %1791 = vmatpush.bf16.msra.mxu0 %v1782
        %1792 = vmatpush.bf16.msra.mxu0 %v1781
        %1793 = vmatpush.bf16.msra.mxu0 %v1780
        %1794 = vmatpush.bf16.msra.mxu0 %v1779
        %1795 = vmatpush.bf16.msra.mxu0 %v1778
        %1796 = vmatpush.bf16.msra.mxu0 %v1777
        %1797 = vmatpush.bf16.msra.mxu0 %v1776
        %1798 = vmatpush.bf16.msra.mxu0 %v1775
        %1799 = vmatmul.bf16.gmra.mxu0 %v1724
        %v1800 = vpop.f32.mrf.mxu0
        %v1801 = vadd.f32 %v1742, %v1800
        %v1802 = vpop.f32.mrf.mxu0
        %v1803 = vadd.f32 %v1742, %v1802
        %1804 = vdwg.mxu0
        %v1805 = vmul.f32 %v1801, %v1355
        %v1806 = vmul.f32 %v1803, %v1360
        %1807 = vst [vmem:[%s729] sm:$0xff] %v1805
        %1808 = vst [vmem:[%s729 + $0x8] sm:$0xff] %v1806
        %s1809 = sand.u32 %s359, 1
        %s1810 = scalar_lea.sflag [#allocation4], %s1809
        %s1811 = sand.u32 %s359, 1
        %s1812 = smul.addr %s1811, 16
        %s1813 = scalar_lea.vmem [#allocation19], %s1812
        %s1814 = sand.u32 %s42, 1
        %s1815 = scalar_lea.sflag [#allocation21], %s1814
        %s1816 = sand.u32 %s385, 1
        %s1817 = smul.addr %s1816, 16
        %s1818 = scalar_lea.vmem [#allocation20], %s1817
        %s1819 = sand.u32 %s42, 1
        %s1820 = scalar_lea.sflag [#allocation21], %s1819
        %s1821 = sand.u32 %s411, 1
        %s1822 = smul.addr %s1821, 64
        %s1823 = scalar_lea.vmem [#allocation22], %s1822
        // Predicated region
        $region117: #{tpu_custom_call.1} parent=75 // pred_check
          %p1824 = pneg %p369
        $region118: #{tpu_custom_call.1} parent=75 // pred_check_branch
          %1826 = sbr.rel (%p1824) target = $region120
        $region119: #{tpu_custom_call.1} parent=75 // pred_region
          %1828 = vsyncadd %s1810, 0
          %s1829 = smul.addr %s42, 2
          %s1830 = smul.addr %s1829, 8
          %s1831 = scalar_lea.hbm %s14, %s1830
          %s1832 = sshll.u32 %s1813, 4
          %s1833 = int_to_ptr.vmem [resolvable:$true] %s1832
          %s1834 = sshll.u32 %s1831, 4
          %s1835 = int_to_ptr.hbm [resolvable:$true] %s1834
          %1840 = dma.vmem_to_hbm [thread:$0]  %s1833, 256, %s1835, %s1810, 128, 128, 8
        $region120: #{tpu_custom_call.1} parent=75 // pred_fallthru
          _
        // Predicated region
        $region121: #{tpu_custom_call.1} parent=75 // pred_check
          %p1841 = pneg %p395
        $region122: #{tpu_custom_call.1} parent=75 // pred_check_branch
          %1843 = sbr.rel (%p1841) target = $region124
        $region123: #{tpu_custom_call.1} parent=75 // pred_region
          %1845 = vsyncadd %s1815, 0
          %s1846 = smul.addr %s42, 2
          %s1847 = smul.addr %s1846, 8
          %s1848 = scalar_lea.hbm %s15, %s1847
          %s1849 = sshll.u32 %s1818, 4
          %s1850 = int_to_ptr.vmem [resolvable:$true] %s1849
          %s1851 = sshll.u32 %s1848, 4
          %s1852 = int_to_ptr.hbm [resolvable:$true] %s1851
          %1857 = dma.vmem_to_hbm [thread:$0]  %s1850, 256, %s1852, %s1815, 128, 128, 8
        $region124: #{tpu_custom_call.1} parent=75 // pred_fallthru
          _
        // Predicated region
        $region125: #{tpu_custom_call.1} parent=75 // pred_check
          %p1858 = pneg %p421
        $region126: #{tpu_custom_call.1} parent=75 // pred_check_branch
          %1860 = sbr.rel (%p1858) target = $region128
        $region127: #{tpu_custom_call.1} parent=75 // pred_region
          #allocation24 [shape = 'u32[6]{0}', space=smem, size = 0x18, scoped, tag = 'DMA stride descriptor']
          %1862 = vsyncadd %s1820, 0
          %s1863 = smul.addr %s42, 2
          %s1864 = smul.addr %s1863, 8
          %s1865 = scalar_lea.hbm %s16, %s1864
          %s1867 = sshll.u32 1, 14
          %s1868 = sxor.u32 4294967295, %s1867
          %s1871 = sshll.u32 7, 18
          %s1872 = sxor.u32 4294967295, %s1871
          %s1873 = sand.u32 0, %s1872
          %s1875 = sor.u32 %s1873, 0
          %s1876 = sshll.u32 %s1823, 4
          %s1877 = int_to_ptr.vmem [resolvable:$true] %s1876
          %s1878 = sshll.u32 %s1865, 4
          %s1879 = int_to_ptr.hbm [resolvable:$true] %s1878
          %1885 = sst [smem:[#allocation24]] 256
          %s1886 = scalar_lea.smem [#allocation24], 1
          %1887 = sst [smem:[%s1886]] 512
          %s1888 = scalar_lea.smem [#allocation24], 2
          %1889 = sst [smem:[%s1888]] 2
          %s1890 = scalar_lea.smem [#allocation24], 3
          %1891 = sst [smem:[%s1890]] 128
          %s1892 = scalar_lea.smem [#allocation24], 4
          %1893 = sst [smem:[%s1892]] 128
          %s1894 = scalar_lea.smem [#allocation24], 5
          %1895 = sst [smem:[%s1894]] 8
          %1897 = dma.general %s1877, 1024, %s1879, %s1820, [#allocation23], [#allocation24], %s1875, 0
        $region128: #{tpu_custom_call.1} parent=75 // pred_fallthru
          _
      $region76: #{tpu_custom_call.1} parent=5 // pred_fallthru
        _
      %p1898 = scmp.le.s32.totalorder 2, %s37
      // Predicated region
      $region129: #{tpu_custom_call.1} parent=5 // pred_check
        %p1899 = pneg %p1898
      $region130: #{tpu_custom_call.1} parent=5 // pred_check_branch
        %1901 = sbr.rel (%p1899) target = $region132
      $region131: #{tpu_custom_call.1} parent=5 // pred_region
        %s1902 = ssub.s32 %s37, 2
        // Predicated region
        $region133: #{tpu_custom_call.1} parent=131 // pred_check
          %p1903 = pneg %p375
        $region134: #{tpu_custom_call.1} parent=131 // pred_check_branch
          %1905 = sbr.rel (%p1903) target = $region136
        $region135: #{tpu_custom_call.1} parent=131 // pred_region
          %s1906 = sand.u32 %s360, 1
          %s1907 = scalar_lea.sflag [#allocation4], %s1906
          %s1908 = sand.u32 %s360, 1
          %s1909 = smul.addr %s1908, 16
          %s1910 = scalar_lea.vmem [#allocation19], %s1909
          %1912 = dma.done %s1907, 256
        $region136: #{tpu_custom_call.1} parent=131 // pred_fallthru
          _
        // Predicated region
        $region137: #{tpu_custom_call.1} parent=131 // pred_check
          %p1913 = pneg %p401
        $region138: #{tpu_custom_call.1} parent=131 // pred_check_branch
          %1915 = sbr.rel (%p1913) target = $region140
        $region139: #{tpu_custom_call.1} parent=131 // pred_region
          %s1916 = sand.u32 %s43, 1
          %s1917 = scalar_lea.sflag [#allocation21], %s1916
          %s1918 = sand.u32 %s386, 1
          %s1919 = smul.addr %s1918, 16
          %s1920 = scalar_lea.vmem [#allocation20], %s1919
          %1922 = dma.done %s1917, 256
        $region140: #{tpu_custom_call.1} parent=131 // pred_fallthru
          _
        // Predicated region
        $region141: #{tpu_custom_call.1} parent=131 // pred_check
          %p1923 = pneg %p427
        $region142: #{tpu_custom_call.1} parent=131 // pred_check_branch
          %1925 = sbr.rel (%p1923) target = $region144
        $region143: #{tpu_custom_call.1} parent=131 // pred_region
          %s1926 = sand.u32 %s43, 1
          %s1927 = scalar_lea.sflag [#allocation21], %s1926
          %s1928 = sand.u32 %s412, 1
          %s1929 = smul.addr %s1928, 64
          %s1930 = scalar_lea.vmem [#allocation22], %s1929
          %1932 = dma.done %s1927, 1024
        $region144: #{tpu_custom_call.1} parent=131 // pred_fallthru
          _
      $region132: #{tpu_custom_call.1} parent=5 // pred_fallthru
        _
    $region6: #{tpu_custom_call.1} parent=1 // loop_footer
      %s41 = sadd.s32 1, %s37
    $region7: #{tpu_custom_call.1} parent=1 // loop_footer_branch
      %36 = sbr.rel target = $region3
    $region8: #{tpu_custom_call.1} parent=1 // loop_exit
      _
    %1933 = vsyncpa [#allocation3], 1
    %s1934 = scalar_lea.sflag [#allocation3], 1
    %1935 = vsyncpa %s1934, 1
    %1936 = vsyncpa [#allocation6], 1
    %1937 = vsyncpa [#allocation9], 1
    %1938 = vsyncpa [#allocation12], 1
    %1939 = vsyncpa [#allocation15], 1
    %1940 = vsyncpa [#allocation18], 1
    %1941 = vsyncpa [#allocation4], 1
    %s1942 = scalar_lea.sflag [#allocation4], 1
    %1943 = vsyncpa %s1942, 1
    %1944 = vsyncpa [#allocation21], 1
    %s1945 = scalar_lea.sflag [#allocation21], 1
    %1946 = vsyncpa %s1945, 1

</llo_original>
